<compile_context>
chip_gen: v7x
topology: tpu7x:2x2x1
jax: 0.10.0
libtpu: 0.0.40
codegen_flags: <defaults>
</compile_context>

<pallas_src>
import functools

import jax
import jax.numpy as jnp
from jax.experimental import pallas as pl
from jax.experimental.pallas import tpu as pltpu


# ---------------------------------------------------------------------------
# helpers
# ---------------------------------------------------------------------------
def _round_up(v, m):
    return (v + m - 1) // m * m


def _pad2(a, rows, cols):
    out = jnp.zeros((rows, cols), a.dtype)
    return out.at[: a.shape[0], : a.shape[1]].set(a)


# ---------------------------------------------------------------------------
# Fused Pallas kernel: L x GINConv  +  (virtual) concat  +  final Linear
# ---------------------------------------------------------------------------
def _gin_fused_kernel(num_layers,
                      eps_ref,   # SMEM (L,)          per-layer eps
                      adj_ref,   # VMEM (Np, Np)      dense adjacency (padded)
                      x_ref,     # VMEM (Np, Cp)      padded input features
                      w1_ref,    # VMEM (L, Cp, Cp)   MLP layer-1 weights
                      b1_ref,    # VMEM (L, 1, Cp)    MLP layer-1 biases
                      w2_ref,    # VMEM (L, Cp, Cp)   MLP layer-2 weights
                      b2_ref,    # VMEM (L, 1, Cp)    MLP layer-2 biases
                      wf_ref,    # VMEM (L+1, Cp, Cp) final Linear row-slices
                      bf_ref,    # VMEM (1, Cp)       final Linear bias
                      o_ref):    # VMEM (Np, Cp)      padded output
    a = adj_ref[...]
    h = x_ref[...]

    # final-linear contribution of the raw input block (concat slot 0)
    acc = jnp.dot(h, wf_ref[0], preferred_element_type=jnp.float32)

    for l in range(num_layers):          # static unroll: layers stay in VMEM
        # GINConv aggregation: (1 + eps_l) * h_i + sum_j A[i, j] * h_j   (MXU)
        agg = jnp.dot(a, h, preferred_element_type=jnp.float32)
        z = agg + (1.0 + eps_ref[l]) * h
        # 2-layer MLP: Linear -> ReLU -> Linear
        h1 = jnp.dot(z, w1_ref[l], preferred_element_type=jnp.float32) + b1_ref[l]
        h1 = jnp.maximum(h1, 0.0)
        h = jnp.dot(h1, w2_ref[l], preferred_element_type=jnp.float32) + b2_ref[l]
        # final-linear contribution of this layer's output (concat slot l+1)
        acc = acc + jnp.dot(h, wf_ref[l + 1], preferred_element_type=jnp.float32)

    o_ref[...] = (acc + bf_ref[...]).astype(o_ref.dtype)


# ---------------------------------------------------------------------------
# Wrapper: pad/pack operands, one pallas_call for the whole forward
# ---------------------------------------------------------------------------
def gin_forward(params, x, edge_index, cat=True, lin=True):
    if not (cat and lin):
        # TODO(synk): fused path implements the module defaults (cat=True,
        # lin=True); other flag combinations are not wired up here.
        raise NotImplementedError("fused kernel covers cat=True, lin=True")

    n, c_in = x.shape
    convs = params["convs"]
    num_layers = len(convs)
    c_out = convs[0]["w2"].shape[1]

    npad = _round_up(n, 128)                    # MXU / lane friendly node pad
    cpad = _round_up(max(c_in, c_out), 128)     # lane-dense channel pad

    # glue: dense padded adjacency, A[dst, src] = edge multiplicity
    src, dst = edge_index[0], edge_index[1]
    adj = jnp.zeros((npad, npad), jnp.float32).at[dst, src].add(1.0)

    x_p = _pad2(x.astype(jnp.float32), npad, cpad)

    w1s = jnp.stack([_pad2(p["w1"], cpad, cpad) for p in convs])
    b1s = jnp.stack([_pad2(p["b1"], 1, cpad) for p in convs])
    w2s = jnp.stack([_pad2(p["w2"], cpad, cpad) for p in convs])
    b2s = jnp.stack([_pad2(p["b2"], 1, cpad) for p in convs])
    eps = jnp.concatenate([p["eps"] for p in convs]).astype(jnp.float32)

    # split the final Linear weight into per-concat-slot row slices so the
    # concatenated activation never has to be materialized
    wf = params["final"]["w"]                   # (c_in + L*c_out, c_out)
    segs = [_pad2(wf[:c_in], cpad, cpad)]
    off = c_in
    for _ in range(num_layers):
        segs.append(_pad2(wf[off:off + c_out], cpad, cpad))
        off += c_out
    wfs = jnp.stack(segs)                       # (L+1, Cp, Cp)
    bf = _pad2(params["final"]["b"], 1, cpad)   # (1, Cp)

    out_p = pl.pallas_call(
        functools.partial(_gin_fused_kernel, num_layers),
        out_shape=jax.ShapeDtypeStruct((npad, cpad), jnp.float32),
        in_specs=[
            pl.BlockSpec(memory_space=pltpu.SMEM),   # eps  (L,)
            pl.BlockSpec(memory_space=pltpu.VMEM),   # adj  (Np, Np)
            pl.BlockSpec(memory_space=pltpu.VMEM),   # x    (Np, Cp)
            pl.BlockSpec(memory_space=pltpu.VMEM),   # w1s  (L, Cp, Cp)
            pl.BlockSpec(memory_space=pltpu.VMEM),   # b1s  (L, 1, Cp)
            pl.BlockSpec(memory_space=pltpu.VMEM),   # w2s  (L, Cp, Cp)
            pl.BlockSpec(memory_space=pltpu.VMEM),   # b2s  (L, 1, Cp)
            pl.BlockSpec(memory_space=pltpu.VMEM),   # wfs  (L+1, Cp, Cp)
            pl.BlockSpec(memory_space=pltpu.VMEM),   # bf   (1, Cp)
        ],
        out_specs=pl.BlockSpec(memory_space=pltpu.VMEM),
    )(eps, adj, x_p, w1s, b1s, w2s, b2s, wfs, bf)

    return out_p[:n, :c_out]


# ---------------------------------------------------------------------------
# Parameters (torch Linear default uniform init) + plain-JAX reference
# ---------------------------------------------------------------------------
def init_gin_params(key, in_channels, out_channels, num_layers,
                    cat=True, lin=True):
    params = {"convs": []}

    def linear_init(k, fan_in, fan_out):
        kw, kb = jax.random.split(k)
        bound = 1.0 / jnp.sqrt(jnp.float32(fan_in))
        w = jax.random.uniform(kw, (fan_in, fan_out), jnp.float32, -bound, bound)
        b = jax.random.uniform(kb, (1, fan_out), jnp.float32, -bound, bound)
        return w, b

    c_in = in_channels
    for _ in range(num_layers):
        key, k1, k2 = jax.random.split(key, 3)
        w1, b1 = linear_init(k1, c_in, out_channels)
        w2, b2 = linear_init(k2, out_channels, out_channels)
        params["convs"].append({
            "w1": w1, "b1": b1, "w2": w2, "b2": b2,
            "eps": jnp.zeros((1,), jnp.float32),   # train_eps=True, init 0
        })
        c_in = out_channels

    c_in = in_channels + num_layers * out_channels if cat else out_channels
    if lin:
        key, kf = jax.random.split(key)
        wf, bf = linear_init(kf, c_in, out_channels)
        params["final"] = {"w": wf, "b": bf}
    return params


def gin_reference(params, x, edge_index, cat=True, lin=True):
    """Pure-JAX reference of the PyTorch forward (for correctness checking)."""
    n = x.shape[0]
    adj = jnp.zeros((n, n), jnp.float32).at[edge_index[1], edge_index[0]].add(1.0)
    xs = [x]
    for p in params["convs"]:
        h = xs[-1]
        z = adj @ h + (1.0 + p["eps"][0]) * h
        h1 = jnp.maximum(z @ p["w1"] + p["b1"], 0.0)
        xs.append(h1 @ p["w2"] + p["b2"])
    out = jnp.concatenate(xs, axis=-1) if cat else xs[-1]
    if lin:
        out = out @ params["final"]["w"] + params["final"]["b"]
    return out


# ---------------------------------------------------------------------------
# Demo
# ---------------------------------------------------------------------------
if __name__ == "__main__":
    key = jax.random.PRNGKey(0)

    N = 32              # number of graph nodes
    IN_CHANNELS = 16
    OUT_CHANNELS = 32
    NUM_LAYERS = 3

    key, kx = jax.random.split(key)
    x = jax.random.normal(kx, (N, IN_CHANNELS), jnp.float32)

    # deterministic graph: bidirectional ring (E = 2N edges)
    idx = jnp.arange(N, dtype=jnp.int32)
    src = jnp.concatenate([idx, (idx + 1) % N])
    dst = jnp.concatenate([(idx + 1) % N, idx])
    edge_index = jnp.stack([src, dst], axis=0)   # [2, 2N]

    params = init_gin_params(key, IN_CHANNELS, OUT_CHANNELS, NUM_LAYERS,
                             cat=True, lin=True)

    out = gin_forward(params, x, edge_index, cat=True, lin=True)
    out = jax.block_until_ready(out)

    ref = gin_reference(params, x, edge_index, cat=True, lin=True)

    assert out.shape == (N, OUT_CHANNELS), out.shape
    assert jnp.all(jnp.isfinite(out))
    assert jnp.allclose(out, ref, atol=5e-2, rtol=5e-2), \
        float(jnp.max(jnp.abs(out - ref)))
    print("KERNEL_OK")
</pallas_src>

<mosaic_0001>
module attributes {stable_mosaic.version = 11 : i64} {
  func.func @_gin_fused_kernel(%arg0: memref<3xf32, #tpu.memory_space<smem>>, %arg1: memref<128x128xf32, #tpu.memory_space<vmem>>, %arg2: memref<128x128xf32, #tpu.memory_space<vmem>>, %arg3: memref<3x128x128xf32, #tpu.memory_space<vmem>>, %arg4: memref<3x1x128xf32, #tpu.memory_space<vmem>>, %arg5: memref<3x128x128xf32, #tpu.memory_space<vmem>>, %arg6: memref<3x1x128xf32, #tpu.memory_space<vmem>>, %arg7: memref<4x128x128xf32, #tpu.memory_space<vmem>>, %arg8: memref<1x128xf32, #tpu.memory_space<vmem>>, %arg9: memref<128x128xf32, #tpu.memory_space<vmem>>) attributes {dimension_semantics = [], scalar_prefetch = 0 : i64, scratch_operands = 0 : i64, tpu.core_type = #tpu.core_type<tc>} {
    %c0 = arith.constant 0 : index
    %c0_0 = arith.constant 0 : index
    %0 = vector.load %arg1[%c0, %c0_0] : memref<128x128xf32, #tpu.memory_space<vmem>>, vector<128x128xf32>
    %c0_1 = arith.constant 0 : index
    %c0_2 = arith.constant 0 : index
    %1 = vector.load %arg2[%c0_1, %c0_2] : memref<128x128xf32, #tpu.memory_space<vmem>>, vector<128x128xf32>
    %c0_3 = arith.constant 0 : index
    %c0_4 = arith.constant 0 : index
    %c0_5 = arith.constant 0 : index
    %2 = vector.load %arg7[%c0_3, %c0_4, %c0_5] : memref<4x128x128xf32, #tpu.memory_space<vmem>>, vector<1x128x128xf32>
    %3 = vector.shape_cast %2 : vector<1x128x128xf32> to vector<128x128xf32>
    %cst = arith.constant dense<0.000000e+00> : vector<128x128xf32>
    %4 = tpu.matmul %1, %3, %cst {dimension_numbers = #tpu.dot_dimension_numbers<[1], [0], [0], [1], [0, 0, 1, 1], [], []>} : vector<128x128xf32>, vector<128x128xf32>, vector<128x128xf32> -> vector<128x128xf32>
    %cst_6 = arith.constant dense<0.000000e+00> : vector<128x128xf32>
    %5 = tpu.matmul %0, %1, %cst_6 {dimension_numbers = #tpu.dot_dimension_numbers<[1], [0], [0], [1], [0, 0, 1, 1], [], []>} : vector<128x128xf32>, vector<128x128xf32>, vector<128x128xf32> -> vector<128x128xf32>
    %c0_7 = arith.constant 0 : index
    %6 = memref.load %arg0[%c0_7] : memref<3xf32, #tpu.memory_space<smem>>
    %cst_8 = arith.constant 1.000000e+00 : f32
    %7 = arith.addf %cst_8, %6 : f32
    %8 = vector.broadcast %7 : f32 to vector<128x128xf32>
    %9 = arith.mulf %8, %1 : vector<128x128xf32>
    %10 = arith.addf %5, %9 : vector<128x128xf32>
    %c0_9 = arith.constant 0 : index
    %c0_10 = arith.constant 0 : index
    %c0_11 = arith.constant 0 : index
    %11 = vector.load %arg3[%c0_9, %c0_10, %c0_11] : memref<3x128x128xf32, #tpu.memory_space<vmem>>, vector<1x128x128xf32>
    %12 = vector.shape_cast %11 : vector<1x128x128xf32> to vector<128x128xf32>
    %cst_12 = arith.constant dense<0.000000e+00> : vector<128x128xf32>
    %13 = tpu.matmul %10, %12, %cst_12 {dimension_numbers = #tpu.dot_dimension_numbers<[1], [0], [0], [1], [0, 0, 1, 1], [], []>} : vector<128x128xf32>, vector<128x128xf32>, vector<128x128xf32> -> vector<128x128xf32>
    %c0_13 = arith.constant 0 : index
    %c0_14 = arith.constant 0 : index
    %c0_15 = arith.constant 0 : index
    %14 = vector.load %arg4[%c0_13, %c0_14, %c0_15] : memref<3x1x128xf32, #tpu.memory_space<vmem>>, vector<1x1x128xf32>
    %15 = vector.shape_cast %14 : vector<1x1x128xf32> to vector<1x128xf32>
    %16 = vector.broadcast %15 : vector<1x128xf32> to vector<128x128xf32>
    %17 = arith.addf %13, %16 : vector<128x128xf32>
    %cst_16 = arith.constant 0.000000e+00 : f32
    %18 = vector.broadcast %cst_16 : f32 to vector<128x128xf32>
    %19 = arith.maximumf %17, %18 : vector<128x128xf32>
    %c0_17 = arith.constant 0 : index
    %c0_18 = arith.constant 0 : index
    %c0_19 = arith.constant 0 : index
    %20 = vector.load %arg5[%c0_17, %c0_18, %c0_19] : memref<3x128x128xf32, #tpu.memory_space<vmem>>, vector<1x128x128xf32>
    %21 = vector.shape_cast %20 : vector<1x128x128xf32> to vector<128x128xf32>
    %cst_20 = arith.constant dense<0.000000e+00> : vector<128x128xf32>
    %22 = tpu.matmul %19, %21, %cst_20 {dimension_numbers = #tpu.dot_dimension_numbers<[1], [0], [0], [1], [0, 0, 1, 1], [], []>} : vector<128x128xf32>, vector<128x128xf32>, vector<128x128xf32> -> vector<128x128xf32>
    %c0_21 = arith.constant 0 : index
    %c0_22 = arith.constant 0 : index
    %c0_23 = arith.constant 0 : index
    %23 = vector.load %arg6[%c0_21, %c0_22, %c0_23] : memref<3x1x128xf32, #tpu.memory_space<vmem>>, vector<1x1x128xf32>
    %24 = vector.shape_cast %23 : vector<1x1x128xf32> to vector<1x128xf32>
    %25 = vector.broadcast %24 : vector<1x128xf32> to vector<128x128xf32>
    %26 = arith.addf %22, %25 : vector<128x128xf32>
    %c1 = arith.constant 1 : index
    %c0_24 = arith.constant 0 : index
    %c0_25 = arith.constant 0 : index
    %27 = vector.load %arg7[%c1, %c0_24, %c0_25] : memref<4x128x128xf32, #tpu.memory_space<vmem>>, vector<1x128x128xf32>
    %28 = vector.shape_cast %27 : vector<1x128x128xf32> to vector<128x128xf32>
    %cst_26 = arith.constant dense<0.000000e+00> : vector<128x128xf32>
    %29 = tpu.matmul %26, %28, %cst_26 {dimension_numbers = #tpu.dot_dimension_numbers<[1], [0], [0], [1], [0, 0, 1, 1], [], []>} : vector<128x128xf32>, vector<128x128xf32>, vector<128x128xf32> -> vector<128x128xf32>
    %30 = arith.addf %4, %29 : vector<128x128xf32>
    %cst_27 = arith.constant dense<0.000000e+00> : vector<128x128xf32>
    %31 = tpu.matmul %0, %26, %cst_27 {dimension_numbers = #tpu.dot_dimension_numbers<[1], [0], [0], [1], [0, 0, 1, 1], [], []>} : vector<128x128xf32>, vector<128x128xf32>, vector<128x128xf32> -> vector<128x128xf32>
    %c1_28 = arith.constant 1 : index
    %32 = memref.load %arg0[%c1_28] : memref<3xf32, #tpu.memory_space<smem>>
    %cst_29 = arith.constant 1.000000e+00 : f32
    %33 = arith.addf %cst_29, %32 : f32
    %34 = vector.broadcast %33 : f32 to vector<128x128xf32>
    %35 = arith.mulf %34, %26 : vector<128x128xf32>
    %36 = arith.addf %31, %35 : vector<128x128xf32>
    %c1_30 = arith.constant 1 : index
    %c0_31 = arith.constant 0 : index
    %c0_32 = arith.constant 0 : index
    %37 = vector.load %arg3[%c1_30, %c0_31, %c0_32] : memref<3x128x128xf32, #tpu.memory_space<vmem>>, vector<1x128x128xf32>
    %38 = vector.shape_cast %37 : vector<1x128x128xf32> to vector<128x128xf32>
    %cst_33 = arith.constant dense<0.000000e+00> : vector<128x128xf32>
    %39 = tpu.matmul %36, %38, %cst_33 {dimension_numbers = #tpu.dot_dimension_numbers<[1], [0], [0], [1], [0, 0, 1, 1], [], []>} : vector<128x128xf32>, vector<128x128xf32>, vector<128x128xf32> -> vector<128x128xf32>
    %c1_34 = arith.constant 1 : index
    %c0_35 = arith.constant 0 : index
    %c0_36 = arith.constant 0 : index
    %40 = vector.load %arg4[%c1_34, %c0_35, %c0_36] : memref<3x1x128xf32, #tpu.memory_space<vmem>>, vector<1x1x128xf32>
    %41 = vector.shape_cast %40 : vector<1x1x128xf32> to vector<1x128xf32>
    %42 = vector.broadcast %41 : vector<1x128xf32> to vector<128x128xf32>
    %43 = arith.addf %39, %42 : vector<128x128xf32>
    %cst_37 = arith.constant 0.000000e+00 : f32
    %44 = vector.broadcast %cst_37 : f32 to vector<128x128xf32>
    %45 = arith.maximumf %43, %44 : vector<128x128xf32>
    %c1_38 = arith.constant 1 : index
    %c0_39 = arith.constant 0 : index
    %c0_40 = arith.constant 0 : index
    %46 = vector.load %arg5[%c1_38, %c0_39, %c0_40] : memref<3x128x128xf32, #tpu.memory_space<vmem>>, vector<1x128x128xf32>
    %47 = vector.shape_cast %46 : vector<1x128x128xf32> to vector<128x128xf32>
    %cst_41 = arith.constant dense<0.000000e+00> : vector<128x128xf32>
    %48 = tpu.matmul %45, %47, %cst_41 {dimension_numbers = #tpu.dot_dimension_numbers<[1], [0], [0], [1], [0, 0, 1, 1], [], []>} : vector<128x128xf32>, vector<128x128xf32>, vector<128x128xf32> -> vector<128x128xf32>
    %c1_42 = arith.constant 1 : index
    %c0_43 = arith.constant 0 : index
    %c0_44 = arith.constant 0 : index
    %49 = vector.load %arg6[%c1_42, %c0_43, %c0_44] : memref<3x1x128xf32, #tpu.memory_space<vmem>>, vector<1x1x128xf32>
    %50 = vector.shape_cast %49 : vector<1x1x128xf32> to vector<1x128xf32>
    %51 = vector.broadcast %50 : vector<1x128xf32> to vector<128x128xf32>
    %52 = arith.addf %48, %51 : vector<128x128xf32>
    %c2 = arith.constant 2 : index
    %c0_45 = arith.constant 0 : index
    %c0_46 = arith.constant 0 : index
    %53 = vector.load %arg7[%c2, %c0_45, %c0_46] : memref<4x128x128xf32, #tpu.memory_space<vmem>>, vector<1x128x128xf32>
    %54 = vector.shape_cast %53 : vector<1x128x128xf32> to vector<128x128xf32>
    %cst_47 = arith.constant dense<0.000000e+00> : vector<128x128xf32>
    %55 = tpu.matmul %52, %54, %cst_47 {dimension_numbers = #tpu.dot_dimension_numbers<[1], [0], [0], [1], [0, 0, 1, 1], [], []>} : vector<128x128xf32>, vector<128x128xf32>, vector<128x128xf32> -> vector<128x128xf32>
    %56 = arith.addf %30, %55 : vector<128x128xf32>
    %cst_48 = arith.constant dense<0.000000e+00> : vector<128x128xf32>
    %57 = tpu.matmul %0, %52, %cst_48 {dimension_numbers = #tpu.dot_dimension_numbers<[1], [0], [0], [1], [0, 0, 1, 1], [], []>} : vector<128x128xf32>, vector<128x128xf32>, vector<128x128xf32> -> vector<128x128xf32>
    %c2_49 = arith.constant 2 : index
    %58 = memref.load %arg0[%c2_49] : memref<3xf32, #tpu.memory_space<smem>>
    %cst_50 = arith.constant 1.000000e+00 : f32
    %59 = arith.addf %cst_50, %58 : f32
    %60 = vector.broadcast %59 : f32 to vector<128x128xf32>
    %61 = arith.mulf %60, %52 : vector<128x128xf32>
    %62 = arith.addf %57, %61 : vector<128x128xf32>
    %c2_51 = arith.constant 2 : index
    %c0_52 = arith.constant 0 : index
    %c0_53 = arith.constant 0 : index
    %63 = vector.load %arg3[%c2_51, %c0_52, %c0_53] : memref<3x128x128xf32, #tpu.memory_space<vmem>>, vector<1x128x128xf32>
    %64 = vector.shape_cast %63 : vector<1x128x128xf32> to vector<128x128xf32>
    %cst_54 = arith.constant dense<0.000000e+00> : vector<128x128xf32>
    %65 = tpu.matmul %62, %64, %cst_54 {dimension_numbers = #tpu.dot_dimension_numbers<[1], [0], [0], [1], [0, 0, 1, 1], [], []>} : vector<128x128xf32>, vector<128x128xf32>, vector<128x128xf32> -> vector<128x128xf32>
    %c2_55 = arith.constant 2 : index
    %c0_56 = arith.constant 0 : index
    %c0_57 = arith.constant 0 : index
    %66 = vector.load %arg4[%c2_55, %c0_56, %c0_57] : memref<3x1x128xf32, #tpu.memory_space<vmem>>, vector<1x1x128xf32>
    %67 = vector.shape_cast %66 : vector<1x1x128xf32> to vector<1x128xf32>
    %68 = vector.broadcast %67 : vector<1x128xf32> to vector<128x128xf32>
    %69 = arith.addf %65, %68 : vector<128x128xf32>
    %cst_58 = arith.constant 0.000000e+00 : f32
    %70 = vector.broadcast %cst_58 : f32 to vector<128x128xf32>
    %71 = arith.maximumf %69, %70 : vector<128x128xf32>
    %c2_59 = arith.constant 2 : index
    %c0_60 = arith.constant 0 : index
    %c0_61 = arith.constant 0 : index
    %72 = vector.load %arg5[%c2_59, %c0_60, %c0_61] : memref<3x128x128xf32, #tpu.memory_space<vmem>>, vector<1x128x128xf32>
    %73 = vector.shape_cast %72 : vector<1x128x128xf32> to vector<128x128xf32>
    %cst_62 = arith.constant dense<0.000000e+00> : vector<128x128xf32>
    %74 = tpu.matmul %71, %73, %cst_62 {dimension_numbers = #tpu.dot_dimension_numbers<[1], [0], [0], [1], [0, 0, 1, 1], [], []>} : vector<128x128xf32>, vector<128x128xf32>, vector<128x128xf32> -> vector<128x128xf32>
    %c2_63 = arith.constant 2 : index
    %c0_64 = arith.constant 0 : index
    %c0_65 = arith.constant 0 : index
    %75 = vector.load %arg6[%c2_63, %c0_64, %c0_65] : memref<3x1x128xf32, #tpu.memory_space<vmem>>, vector<1x1x128xf32>
    %76 = vector.shape_cast %75 : vector<1x1x128xf32> to vector<1x128xf32>
    %77 = vector.broadcast %76 : vector<1x128xf32> to vector<128x128xf32>
    %78 = arith.addf %74, %77 : vector<128x128xf32>
    %c3 = arith.constant 3 : index
    %c0_66 = arith.constant 0 : index
    %c0_67 = arith.constant 0 : index
    %79 = vector.load %arg7[%c3, %c0_66, %c0_67] : memref<4x128x128xf32, #tpu.memory_space<vmem>>, vector<1x128x128xf32>
    %80 = vector.shape_cast %79 : vector<1x128x128xf32> to vector<128x128xf32>
    %cst_68 = arith.constant dense<0.000000e+00> : vector<128x128xf32>
    %81 = tpu.matmul %78, %80, %cst_68 {dimension_numbers = #tpu.dot_dimension_numbers<[1], [0], [0], [1], [0, 0, 1, 1], [], []>} : vector<128x128xf32>, vector<128x128xf32>, vector<128x128xf32> -> vector<128x128xf32>
    %82 = arith.addf %56, %81 : vector<128x128xf32>
    %c0_69 = arith.constant 0 : index
    %c0_70 = arith.constant 0 : index
    %83 = vector.load %arg8[%c0_69, %c0_70] : memref<1x128xf32, #tpu.memory_space<vmem>>, vector<1x128xf32>
    %84 = vector.broadcast %83 : vector<1x128xf32> to vector<128x128xf32>
    %85 = arith.addf %82, %84 : vector<128x128xf32>
    %c0_71 = arith.constant 0 : index
    %c0_72 = arith.constant 0 : index
    %86 = vector.load %arg9[%c0_71, %c0_72] : memref<128x128xf32, #tpu.memory_space<vmem>>, vector<128x128xf32>
    tpu.vector_store %arg9[%c0_71, %c0_72], %85 {strides = array<i32>} : memref<128x128xf32, #tpu.memory_space<vmem>>, vector<128x128xf32>,
    return
  }
}

</mosaic_0001>

<llo_original>
// kernel: tpu_custom_call.1
$region0: #{tpu_custom_call.1}
  #allocation0 [shape = 'u32[]', space=smem, size = 0x4, offset = 0x4, fixed_abs, tag = 'smem constant byte address 0x4 - core index']
  #allocation1 [shape = 'u32[144,128]{1,0:T(1,128)}', space=vmem, size = 0x12000, scoped, tag = 'internal scratch']
  %s0 = inlined_call_operand.hbm [shape: f32[3], index: 0, kind: input, shape index: {}]
  %s1 = inlined_call_operand.hbm [shape: f32[128,128], index: 1, kind: input, shape index: {}]
  %s2 = inlined_call_operand.hbm [shape: f32[128,128], index: 2, kind: input, shape index: {}]
  %s3 = inlined_call_operand.hbm [shape: f32[3,128,128], index: 3, kind: input, shape index: {}]
  %s4 = inlined_call_operand.vmem [shape: f32[3,1,128], index: 4, kind: input, shape index: {}]
  %s5 = inlined_call_operand.hbm [shape: f32[3,128,128], index: 5, kind: input, shape index: {}]
  %s6 = inlined_call_operand.vmem [shape: f32[3,1,128], index: 6, kind: input, shape index: {}]
  %s7 = inlined_call_operand.hbm [shape: f32[4,128,128], index: 7, kind: input, shape index: {}]
  %s8 = inlined_call_operand.vmem [shape: f32[1,128], index: 8, kind: input, shape index: {}]
  %s9 = inlined_call_operand.hbm [shape: f32[128,128], index: 9, kind: output, shape index: {}]
  %s10 = sld [smem:[#allocation0]]
  $region70: #{tpu_custom_call.1} parent=0
    _
  %s12 = ssub.s32 1, %s10
  %s13 = scalar_select 0, %s12, %s10
  $region1: #{tpu_custom_call.1} parent=0
    #allocation2 [shape = 'u8[512]{0}', space=smem, size = 0x200, scoped, tag = 'input window, operand 0, single buffered']
    #allocation3 [shape = 's32[1]{0}', space=sflag, size = 0x4, scoped, tag = 'scoped memory for tpu_custom_call.1']
    #allocation4 [shape = 's32[1]{0}', space=sflag, size = 0x4, scoped, tag = 'scoped memory for tpu_custom_call.1']
    #allocation5 [shape = 's32[1]{0}', space=sflag, size = 0x4, scoped, tag = 'scoped memory for tpu_custom_call.1']
    #allocation6 [shape = 'u8[65536]{0}', space=vmem, size = 0x10000, scoped, tag = 'input window, operand 1, single buffered']
    #allocation7 [shape = 'u8[65536]{0}', space=vmem, size = 0x10000, scoped, tag = 'input window, operand 2, single buffered']
    #allocation8 [shape = 's32[1]{0}', space=sflag, size = 0x4, scoped, tag = 'scoped memory for tpu_custom_call.1']
    #allocation9 [shape = 'u8[196608]{0}', space=vmem, size = 0x30000, scoped, tag = 'input window, operand 3, single buffered']
    #allocation10 [shape = 'u8[196608]{0}', space=vmem, size = 0x30000, scoped, tag = 'input window, operand 5, single buffered']
    #allocation11 [shape = 's32[1]{0}', space=sflag, size = 0x4, scoped, tag = 'scoped memory for tpu_custom_call.1']
    #allocation12 [shape = 'u8[262144]{0}', space=vmem, size = 0x40000, scoped, tag = 'input window, operand 7, single buffered']
    #allocation13 [shape = 'u8[65536]{0}', space=vmem, size = 0x10000, scoped, tag = 'output window, operand 0, single buffered']
    %14 = vsyncpa [#allocation5], 0
    %15 = vsyncpa [#allocation3], 0
    %16 = vsyncpa [#allocation8], 0
    %17 = vsyncpa [#allocation11], 0
    %18 = vsyncpa [#allocation4], 0
    // Predicated region
    $region2: #{tpu_custom_call.1} parent=1 // pred_check
      _
    $region3: #{tpu_custom_call.1} parent=1 // pred_check_branch
      %20 = sbr.rel (0) target = $region5
    $region4: #{tpu_custom_call.1} parent=1 // pred_region
      %s22 = ssub.s32 16, 16
      %23 = vsyncadd [#allocation5], %s22
      %26 = dma.hbm_to_smem %s0, 16, [#allocation2], [#allocation5]
    $region5: #{tpu_custom_call.1} parent=1 // pred_fallthru
      _
    // Predicated region
    $region6: #{tpu_custom_call.1} parent=1 // pred_check
      _
    $region7: #{tpu_custom_call.1} parent=1 // pred_check_branch
      %28 = sbr.rel (0) target = $region9
    $region8: #{tpu_custom_call.1} parent=1 // pred_region
      %s30 = ssub.s32 2048, 2048
      %31 = vsyncadd [#allocation3], %s30
      %s32 = sshll.u32 [#allocation6], 4
      %s33 = int_to_ptr.vmem [resolvable:$true] %s32
      %38 = dma.hbm_to_vmem [thread:$0]  %s1, 2048, %s33, [#allocation3], 128, 128, 8
    $region9: #{tpu_custom_call.1} parent=1 // pred_fallthru
      _
    // Predicated region
    $region10: #{tpu_custom_call.1} parent=1 // pred_check
      _
    $region11: #{tpu_custom_call.1} parent=1 // pred_check_branch
      %40 = sbr.rel (0) target = $region13
    $region12: #{tpu_custom_call.1} parent=1 // pred_region
      %s42 = ssub.s32 2048, 2048
      %43 = vsyncadd [#allocation8], %s42
      %s44 = sshll.u32 [#allocation7], 4
      %s45 = int_to_ptr.vmem [resolvable:$true] %s44
      %50 = dma.hbm_to_vmem [thread:$0]  %s2, 2048, %s45, [#allocation8], 128, 128, 8
    $region13: #{tpu_custom_call.1} parent=1 // pred_fallthru
      _
    // Predicated region
    $region14: #{tpu_custom_call.1} parent=1 // pred_check
      _
    $region15: #{tpu_custom_call.1} parent=1 // pred_check_branch
      %52 = sbr.rel (0) target = $region17
    $region16: #{tpu_custom_call.1} parent=1 // pred_region
      %s54 = ssub.s32 6144, 6144
      %55 = vsyncadd [#allocation8], %s54
      %s56 = sshll.u32 [#allocation9], 4
      %s57 = int_to_ptr.vmem [resolvable:$true] %s56
      %62 = dma.hbm_to_vmem [thread:$0]  %s3, 6144, %s57, [#allocation8], 128, 128, 8
    $region17: #{tpu_custom_call.1} parent=1 // pred_fallthru
      _
    // Predicated region
    $region18: #{tpu_custom_call.1} parent=1 // pred_check
      _
    $region19: #{tpu_custom_call.1} parent=1 // pred_check_branch
      %64 = sbr.rel (0) target = $region21
    $region20: #{tpu_custom_call.1} parent=1 // pred_region
      _
    $region21: #{tpu_custom_call.1} parent=1 // pred_fallthru
      _
    // Predicated region
    $region22: #{tpu_custom_call.1} parent=1 // pred_check
      _
    $region23: #{tpu_custom_call.1} parent=1 // pred_check_branch
      %66 = sbr.rel (0) target = $region25
    $region24: #{tpu_custom_call.1} parent=1 // pred_region
      %s68 = ssub.s32 6144, 6144
      %69 = vsyncadd [#allocation11], %s68
      %s70 = sshll.u32 [#allocation10], 4
      %s71 = int_to_ptr.vmem [resolvable:$true] %s70
      %76 = dma.hbm_to_vmem [thread:$0]  %s5, 6144, %s71, [#allocation11], 128, 128, 8
    $region25: #{tpu_custom_call.1} parent=1 // pred_fallthru
      _
    // Predicated region
    $region26: #{tpu_custom_call.1} parent=1 // pred_check
      _
    $region27: #{tpu_custom_call.1} parent=1 // pred_check_branch
      %78 = sbr.rel (0) target = $region29
    $region28: #{tpu_custom_call.1} parent=1 // pred_region
      _
    $region29: #{tpu_custom_call.1} parent=1 // pred_fallthru
      _
    // Predicated region
    $region30: #{tpu_custom_call.1} parent=1 // pred_check
      _
    $region31: #{tpu_custom_call.1} parent=1 // pred_check_branch
      %80 = sbr.rel (0) target = $region33
    $region32: #{tpu_custom_call.1} parent=1 // pred_region
      %s82 = ssub.s32 8192, 8192
      %83 = vsyncadd [#allocation11], %s82
      %s84 = sshll.u32 [#allocation12], 4
      %s85 = int_to_ptr.vmem [resolvable:$true] %s84
      %90 = dma.hbm_to_vmem [thread:$0]  %s7, 8192, %s85, [#allocation11], 128, 128, 8
    $region33: #{tpu_custom_call.1} parent=1 // pred_fallthru
      _
    // Predicated region
    $region34: #{tpu_custom_call.1} parent=1 // pred_check
      _
    $region35: #{tpu_custom_call.1} parent=1 // pred_check_branch
      %92 = sbr.rel (0) target = $region37
    $region36: #{tpu_custom_call.1} parent=1 // pred_region
      _
    $region37: #{tpu_custom_call.1} parent=1 // pred_fallthru
      _
    // Predicated region
    $region38: #{tpu_custom_call.1} parent=1 // pred_check
      _
    $region39: #{tpu_custom_call.1} parent=1 // pred_check_branch
      %94 = sbr.rel (0) target = $region41
    $region40: #{tpu_custom_call.1} parent=1 // pred_region
      %95 = dma.done [#allocation5], 16
    $region41: #{tpu_custom_call.1} parent=1 // pred_fallthru
      _
    // Predicated region
    $region42: #{tpu_custom_call.1} parent=1 // pred_check
      _
    $region43: #{tpu_custom_call.1} parent=1 // pred_check_branch
      %97 = sbr.rel (0) target = $region45
    $region44: #{tpu_custom_call.1} parent=1 // pred_region
      %98 = dma.done [#allocation3], 2048
    $region45: #{tpu_custom_call.1} parent=1 // pred_fallthru
      _
    // Predicated region
    $region46: #{tpu_custom_call.1} parent=1 // pred_check
      _
    $region47: #{tpu_custom_call.1} parent=1 // pred_check_branch
      %100 = sbr.rel (0) target = $region49
    $region48: #{tpu_custom_call.1} parent=1 // pred_region
      %101 = dma.done [#allocation8], 2048
    $region49: #{tpu_custom_call.1} parent=1 // pred_fallthru
      _
    // Predicated region
    $region50: #{tpu_custom_call.1} parent=1 // pred_check
      _
    $region51: #{tpu_custom_call.1} parent=1 // pred_check_branch
      %103 = sbr.rel (0) target = $region53
    $region52: #{tpu_custom_call.1} parent=1 // pred_region
      %104 = dma.done [#allocation8], 6144
    $region53: #{tpu_custom_call.1} parent=1 // pred_fallthru
      _
    // Predicated region
    $region54: #{tpu_custom_call.1} parent=1 // pred_check
      _
    $region55: #{tpu_custom_call.1} parent=1 // pred_check_branch
      %106 = sbr.rel (0) target = $region57
    $region56: #{tpu_custom_call.1} parent=1 // pred_region
      %107 = dma.done [#allocation11], 6144
    $region57: #{tpu_custom_call.1} parent=1 // pred_fallthru
      _
    // Predicated region
    $region58: #{tpu_custom_call.1} parent=1 // pred_check
      _
    $region59: #{tpu_custom_call.1} parent=1 // pred_check_branch
      %109 = sbr.rel (0) target = $region61
    $region60: #{tpu_custom_call.1} parent=1 // pred_region
      %110 = dma.done [#allocation11], 8192
    $region61: #{tpu_custom_call.1} parent=1 // pred_fallthru
      _
    %111 = sfence
    %v112 = vld [vmem:[#allocation6] sm:$0xff]
    %v113 = vld [vmem:[#allocation6 + $0x8] sm:$0xff]
    %v114 = vld [vmem:[#allocation6 + $0x10] sm:$0xff]
    %v115 = vld [vmem:[#allocation6 + $0x18] sm:$0xff]
    %v116 = vld [vmem:[#allocation6 + $0x20] sm:$0xff]
    %v117 = vld [vmem:[#allocation6 + $0x28] sm:$0xff]
    %v118 = vld [vmem:[#allocation6 + $0x30] sm:$0xff]
    %v119 = vld [vmem:[#allocation6 + $0x38] sm:$0xff]
    %v120 = vld [vmem:[#allocation6 + $0x40] sm:$0xff]
    %v121 = vld [vmem:[#allocation6 + $0x48] sm:$0xff]
    %v122 = vld [vmem:[#allocation6 + $0x50] sm:$0xff]
    %v123 = vld [vmem:[#allocation6 + $0x58] sm:$0xff]
    %v124 = vld [vmem:[#allocation6 + $0x60] sm:$0xff]
    %v125 = vld [vmem:[#allocation6 + $0x68] sm:$0xff]
    %v126 = vld [vmem:[#allocation6 + $0x70] sm:$0xff]
    %v127 = vld [vmem:[#allocation6 + $0x78] sm:$0xff]
    %v128 = vld [vmem:[#allocation7] sm:$0xff]
    %v129 = vld [vmem:[#allocation7 + $0x8] sm:$0xff]
    %v130 = vld [vmem:[#allocation7 + $0x10] sm:$0xff]
    %v131 = vld [vmem:[#allocation7 + $0x18] sm:$0xff]
    %v132 = vld [vmem:[#allocation7 + $0x20] sm:$0xff]
    %v133 = vld [vmem:[#allocation7 + $0x28] sm:$0xff]
    %v134 = vld [vmem:[#allocation7 + $0x30] sm:$0xff]
    %v135 = vld [vmem:[#allocation7 + $0x38] sm:$0xff]
    %v136 = vld [vmem:[#allocation7 + $0x40] sm:$0xff]
    %v137 = vld [vmem:[#allocation7 + $0x48] sm:$0xff]
    %v138 = vld [vmem:[#allocation7 + $0x50] sm:$0xff]
    %v139 = vld [vmem:[#allocation7 + $0x58] sm:$0xff]
    %v140 = vld [vmem:[#allocation7 + $0x60] sm:$0xff]
    %v141 = vld [vmem:[#allocation7 + $0x68] sm:$0xff]
    %v142 = vld [vmem:[#allocation7 + $0x70] sm:$0xff]
    %v143 = vld [vmem:[#allocation7 + $0x78] sm:$0xff]
    %v144 = vld [vmem:[#allocation12] sm:$0xff]
    %v145 = vld [vmem:[#allocation12 + $0x8] sm:$0xff]
    %v146 = vld [vmem:[#allocation12 + $0x10] sm:$0xff]
    %v147 = vld [vmem:[#allocation12 + $0x18] sm:$0xff]
    %v148 = vld [vmem:[#allocation12 + $0x20] sm:$0xff]
    %v149 = vld [vmem:[#allocation12 + $0x28] sm:$0xff]
    %v150 = vld [vmem:[#allocation12 + $0x30] sm:$0xff]
    %v151 = vld [vmem:[#allocation12 + $0x38] sm:$0xff]
    %v152 = vld [vmem:[#allocation12 + $0x40] sm:$0xff]
    %v153 = vld [vmem:[#allocation12 + $0x48] sm:$0xff]
    %v154 = vld [vmem:[#allocation12 + $0x50] sm:$0xff]
    %v155 = vld [vmem:[#allocation12 + $0x58] sm:$0xff]
    %v156 = vld [vmem:[#allocation12 + $0x60] sm:$0xff]
    %v157 = vld [vmem:[#allocation12 + $0x68] sm:$0xff]
    %v158 = vld [vmem:[#allocation12 + $0x70] sm:$0xff]
    %v159 = vld [vmem:[#allocation12 + $0x78] sm:$0xff]
    %s160 = sld [smem:[#allocation2]]
    %s161 = sadd.f32 %s160, 1.0
    %v162 = vstv %s161
    %v163 = vmul.f32 %v162, %v128
    %v164 = vmul.f32 %v162, %v129
    %v165 = vmul.f32 %v162, %v130
    %v166 = vmul.f32 %v162, %v131
    %v167 = vmul.f32 %v162, %v132
    %v168 = vmul.f32 %v162, %v133
    %v169 = vmul.f32 %v162, %v134
    %v170 = vmul.f32 %v162, %v135
    %v171 = vmul.f32 %v162, %v136
    %v172 = vmul.f32 %v162, %v137
    %v173 = vmul.f32 %v162, %v138
    %v174 = vmul.f32 %v162, %v139
    %v175 = vmul.f32 %v162, %v140
    %v176 = vmul.f32 %v162, %v141
    %v177 = vmul.f32 %v162, %v142
    %v178 = vmul.f32 %v162, %v143
    %179 = vmatprep.subr.mxu0 0.0
    %180 = vmatpush1.msra.mxu0 %v128
    %181 = vmatprep.subr.mxu0 0.0
    %182 = vmatpush1.msra.mxu0 %v129
    %183 = vmatprep.subr.mxu0 0.0
    %184 = vmatpush1.msra.mxu0 %v130
    %185 = vmatprep.subr.mxu0 0.0
    %186 = vmatpush1.msra.mxu0 %v131
    %187 = vmatprep.subr.mxu0 0.0
    %188 = vmatpush1.msra.mxu0 %v132
    %189 = vmatprep.subr.mxu0 0.0
    %190 = vmatpush1.msra.mxu0 %v133
    %191 = vmatprep.subr.mxu0 0.0
    %192 = vmatpush1.msra.mxu0 %v134
    %193 = vmatprep.subr.mxu0 0.0
    %194 = vmatpush1.msra.mxu0 %v135
    %195 = vmatprep.subr.mxu0 0.0
    %196 = vmatpush1.msra.mxu0 %v136
    %197 = vmatprep.subr.mxu0 0.0
    %198 = vmatpush1.msra.mxu0 %v137
    %199 = vmatprep.subr.mxu0 0.0
    %200 = vmatpush1.msra.mxu0 %v138
    %201 = vmatprep.subr.mxu0 0.0
    %202 = vmatpush1.msra.mxu0 %v139
    %203 = vmatprep.subr.mxu0 0.0
    %204 = vmatpush1.msra.mxu0 %v140
    %205 = vmatprep.subr.mxu0 0.0
    %206 = vmatpush1.msra.mxu0 %v141
    %207 = vmatprep.subr.mxu0 0.0
    %208 = vmatpush1.msra.mxu0 %v142
    %209 = vmatprep.subr.mxu0 0.0
    %210 = vmatpush1.msra.mxu0 %v143
    %211 = vmatprep.subr.mxu0 0.0
    %212 = vmatpush1.msra.mxu0 0.0
    %213 = vmatprep.subr.mxu0 0.0
    %214 = vmatpush1.msra.mxu0 0.0
    %215 = vmatprep.subr.mxu0 0.0
    %216 = vmatpush1.msra.mxu0 0.0
    %217 = vmatprep.subr.mxu0 0.0
    %218 = vmatpush1.msra.mxu0 0.0
    %219 = vmatprep.subr.mxu0 0.0
    %220 = vmatpush1.msra.mxu0 0.0
    %221 = vmatprep.subr.mxu0 0.0
    %222 = vmatpush1.msra.mxu0 0.0
    %223 = vmatprep.subr.mxu0 0.0
    %224 = vmatpush1.msra.mxu0 0.0
    %225 = vmatprep.subr.mxu0 0.0
    %226 = vmatpush1.msra.mxu0 0.0
    %227 = vmatprep.subr.mxu0 0.0
    %228 = vmatpush1.msra.mxu0 0.0
    %229 = vmatprep.subr.mxu0 0.0
    %230 = vmatpush1.msra.mxu0 0.0
    %231 = vmatprep.subr.mxu0 0.0
    %232 = vmatpush1.msra.mxu0 0.0
    %233 = vmatprep.subr.mxu0 0.0
    %234 = vmatpush1.msra.mxu0 0.0
    %235 = vmatprep.subr.mxu0 0.0
    %236 = vmatpush1.msra.mxu0 0.0
    %237 = vmatprep.subr.mxu0 0.0
    %238 = vmatpush1.msra.mxu0 0.0
    %239 = vmatprep.subr.mxu0 0.0
    %240 = vmatpush1.msra.mxu0 0.0
    %241 = vmatprep.subr.mxu0 0.0
    %242 = vmatpush1.msra.mxu0 0.0
    %243 = vmatprep.mubr.f32.mxu0 0.0
    %244 = vmatmul.mubr.f32.gmra.mrb[0].mxu0 %v112
    %v245 = vpop.f32.mrb[0].mxu0
    %v246 = vadd.f32 %v163, %v245
    %v247 = vpop.f32.mrb[0].mxu0
    %248 = vmatprep.mubr.f32.mxu0 0.0
    %249 = vmatmul.mubr.f32.gmra.mrb[0].mxu0 %v113
    %v250 = vpop.f32.mrb[0].mxu0
    %v251 = vadd.f32 %v164, %v250
    %v252 = vpop.f32.mrb[0].mxu0
    %253 = vmatprep.mubr.f32.mxu0 0.0
    %254 = vmatmul.mubr.f32.gmra.mrb[0].mxu0 %v114
    %v255 = vpop.f32.mrb[0].mxu0
    %v256 = vadd.f32 %v165, %v255
    %v257 = vpop.f32.mrb[0].mxu0
    %258 = vmatprep.mubr.f32.mxu0 0.0
    %259 = vmatmul.mubr.f32.gmra.mrb[0].mxu0 %v115
    %v260 = vpop.f32.mrb[0].mxu0
    %v261 = vadd.f32 %v166, %v260
    %v262 = vpop.f32.mrb[0].mxu0
    %263 = vmatprep.mubr.f32.mxu0 0.0
    %264 = vmatmul.mubr.f32.gmra.mrb[0].mxu0 %v116
    %v265 = vpop.f32.mrb[0].mxu0
    %v266 = vadd.f32 %v167, %v265
    %v267 = vpop.f32.mrb[0].mxu0
    %268 = vmatprep.mubr.f32.mxu0 0.0
    %269 = vmatmul.mubr.f32.gmra.mrb[0].mxu0 %v117
    %v270 = vpop.f32.mrb[0].mxu0
    %v271 = vadd.f32 %v168, %v270
    %v272 = vpop.f32.mrb[0].mxu0
    %273 = vmatprep.mubr.f32.mxu0 0.0
    %274 = vmatmul.mubr.f32.gmra.mrb[0].mxu0 %v118
    %v275 = vpop.f32.mrb[0].mxu0
    %v276 = vadd.f32 %v169, %v275
    %v277 = vpop.f32.mrb[0].mxu0
    %278 = vmatprep.mubr.f32.mxu0 0.0
    %279 = vmatmul.mubr.f32.gmra.mrb[0].mxu0 %v119
    %v280 = vpop.f32.mrb[0].mxu0
    %v281 = vadd.f32 %v170, %v280
    %v282 = vpop.f32.mrb[0].mxu0
    %283 = vmatprep.mubr.f32.mxu0 0.0
    %284 = vmatmul.mubr.f32.gmra.mrb[0].mxu0 %v120
    %v285 = vpop.f32.mrb[0].mxu0
    %v286 = vadd.f32 %v171, %v285
    %v287 = vpop.f32.mrb[0].mxu0
    %288 = vmatprep.mubr.f32.mxu0 0.0
    %289 = vmatmul.mubr.f32.gmra.mrb[0].mxu0 %v121
    %v290 = vpop.f32.mrb[0].mxu0
    %v291 = vadd.f32 %v172, %v290
    %v292 = vpop.f32.mrb[0].mxu0
    %293 = vmatprep.mubr.f32.mxu0 0.0
    %294 = vmatmul.mubr.f32.gmra.mrb[0].mxu0 %v122
    %v295 = vpop.f32.mrb[0].mxu0
    %v296 = vadd.f32 %v173, %v295
    %v297 = vpop.f32.mrb[0].mxu0
    %298 = vmatprep.mubr.f32.mxu0 0.0
    %299 = vmatmul.mubr.f32.gmra.mrb[0].mxu0 %v123
    %v300 = vpop.f32.mrb[0].mxu0
    %v301 = vadd.f32 %v174, %v300
    %v302 = vpop.f32.mrb[0].mxu0
    %303 = vmatprep.mubr.f32.mxu0 0.0
    %304 = vmatmul.mubr.f32.gmra.mrb[0].mxu0 %v124
    %v305 = vpop.f32.mrb[0].mxu0
    %v306 = vadd.f32 %v175, %v305
    %v307 = vpop.f32.mrb[0].mxu0
    %308 = vmatprep.mubr.f32.mxu0 0.0
    %309 = vmatmul.mubr.f32.gmra.mrb[0].mxu0 %v125
    %v310 = vpop.f32.mrb[0].mxu0
    %v311 = vadd.f32 %v176, %v310
    %v312 = vpop.f32.mrb[0].mxu0
    %313 = vmatprep.mubr.f32.mxu0 0.0
    %314 = vmatmul.mubr.f32.gmra.mrb[0].mxu0 %v126
    %v315 = vpop.f32.mrb[0].mxu0
    %v316 = vadd.f32 %v177, %v315
    %v317 = vpop.f32.mrb[0].mxu0
    %318 = vmatprep.mubr.f32.mxu0 0.0
    %319 = vmatmul.mubr.f32.gmra.mrb[0].mxu0 %v127
    %v320 = vpop.f32.mrb[0].mxu0
    %v321 = vadd.f32 %v178, %v320
    %v322 = vpop.f32.mrb[0].mxu0
    %323 = vdwg.mxu0
    %v324 = vld [vmem:[#allocation9] sm:$0xff]
    %v325 = vld [vmem:[#allocation9 + $0x8] sm:$0xff]
    %v326 = vld [vmem:[#allocation9 + $0x10] sm:$0xff]
    %v327 = vld [vmem:[#allocation9 + $0x18] sm:$0xff]
    %v328 = vld [vmem:[#allocation9 + $0x20] sm:$0xff]
    %v329 = vld [vmem:[#allocation9 + $0x28] sm:$0xff]
    %v330 = vld [vmem:[#allocation9 + $0x30] sm:$0xff]
    %v331 = vld [vmem:[#allocation9 + $0x38] sm:$0xff]
    %v332 = vld [vmem:[#allocation9 + $0x40] sm:$0xff]
    %v333 = vld [vmem:[#allocation9 + $0x48] sm:$0xff]
    %v334 = vld [vmem:[#allocation9 + $0x50] sm:$0xff]
    %v335 = vld [vmem:[#allocation9 + $0x58] sm:$0xff]
    %v336 = vld [vmem:[#allocation9 + $0x60] sm:$0xff]
    %v337 = vld [vmem:[#allocation9 + $0x68] sm:$0xff]
    %v338 = vld [vmem:[#allocation9 + $0x70] sm:$0xff]
    %v339 = vld [vmem:[#allocation9 + $0x78] sm:$0xff]
    %v340 = vld [vmem:[%s4] sm:$0x1]
    %v342 = vlaneseq
    %v343 = vshrl.u32 %v342, 7
    %v344 = vsub.s32 0, %v343
    %v345 = vrot.slane %v340, %v344
    %347 = vmatprep.subr.mxu0 0.0
    %348 = vmatpush1.msra.mxu0 %v324
    %349 = vmatprep.subr.mxu0 0.0
    %350 = vmatpush1.msra.mxu0 %v325
    %351 = vmatprep.subr.mxu0 0.0
    %352 = vmatpush1.msra.mxu0 %v326
    %353 = vmatprep.subr.mxu0 0.0
    %354 = vmatpush1.msra.mxu0 %v327
    %355 = vmatprep.subr.mxu0 0.0
    %356 = vmatpush1.msra.mxu0 %v328
    %357 = vmatprep.subr.mxu0 0.0
    %358 = vmatpush1.msra.mxu0 %v329
    %359 = vmatprep.subr.mxu0 0.0
    %360 = vmatpush1.msra.mxu0 %v330
    %361 = vmatprep.subr.mxu0 0.0
    %362 = vmatpush1.msra.mxu0 %v331
    %363 = vmatprep.subr.mxu0 0.0
    %364 = vmatpush1.msra.mxu0 %v332
    %365 = vmatprep.subr.mxu0 0.0
    %366 = vmatpush1.msra.mxu0 %v333
    %367 = vmatprep.subr.mxu0 0.0
    %368 = vmatpush1.msra.mxu0 %v334
    %369 = vmatprep.subr.mxu0 0.0
    %370 = vmatpush1.msra.mxu0 %v335
    %371 = vmatprep.subr.mxu0 0.0
    %372 = vmatpush1.msra.mxu0 %v336
    %373 = vmatprep.subr.mxu0 0.0
    %374 = vmatpush1.msra.mxu0 %v337
    %375 = vmatprep.subr.mxu0 0.0
    %376 = vmatpush1.msra.mxu0 %v338
    %377 = vmatprep.subr.mxu0 0.0
    %378 = vmatpush1.msra.mxu0 %v339
    %379 = vmatprep.subr.mxu0 0.0
    %380 = vmatpush1.msra.mxu0 0.0
    %381 = vmatprep.subr.mxu0 0.0
    %382 = vmatpush1.msra.mxu0 0.0
    %383 = vmatprep.subr.mxu0 0.0
    %384 = vmatpush1.msra.mxu0 0.0
    %385 = vmatprep.subr.mxu0 0.0
    %386 = vmatpush1.msra.mxu0 0.0
    %387 = vmatprep.subr.mxu0 0.0
    %388 = vmatpush1.msra.mxu0 0.0
    %389 = vmatprep.subr.mxu0 0.0
    %390 = vmatpush1.msra.mxu0 0.0
    %391 = vmatprep.subr.mxu0 0.0
    %392 = vmatpush1.msra.mxu0 0.0
    %393 = vmatprep.subr.mxu0 0.0
    %394 = vmatpush1.msra.mxu0 0.0
    %395 = vmatprep.subr.mxu0 0.0
    %396 = vmatpush1.msra.mxu0 0.0
    %397 = vmatprep.subr.mxu0 0.0
    %398 = vmatpush1.msra.mxu0 0.0
    %399 = vmatprep.subr.mxu0 0.0
    %400 = vmatpush1.msra.mxu0 0.0
    %401 = vmatprep.subr.mxu0 0.0
    %402 = vmatpush1.msra.mxu0 0.0
    %403 = vmatprep.subr.mxu0 0.0
    %404 = vmatpush1.msra.mxu0 0.0
    %405 = vmatprep.subr.mxu0 0.0
    %406 = vmatpush1.msra.mxu0 0.0
    %407 = vmatprep.subr.mxu0 0.0
    %408 = vmatpush1.msra.mxu0 0.0
    %409 = vmatprep.subr.mxu0 0.0
    %410 = vmatpush1.msra.mxu0 0.0
    %411 = vmatprep.mubr.f32.mxu0 0.0
    %412 = vmatmul.mubr.f32.gmra.mrb[0].mxu0 %v246
    %v413 = vpop.f32.mrb[0].mxu0
    %v414 = vadd.f32 %v345, %v413
    %v415 = vpop.f32.mrb[0].mxu0
    %416 = vmatprep.mubr.f32.mxu0 0.0
    %417 = vmatmul.mubr.f32.gmra.mrb[0].mxu0 %v251
    %v418 = vpop.f32.mrb[0].mxu0
    %v419 = vadd.f32 %v345, %v418
    %v420 = vpop.f32.mrb[0].mxu0
    %421 = vmatprep.mubr.f32.mxu0 0.0
    %422 = vmatmul.mubr.f32.gmra.mrb[0].mxu0 %v256
    %v423 = vpop.f32.mrb[0].mxu0
    %v424 = vadd.f32 %v345, %v423
    %v425 = vpop.f32.mrb[0].mxu0
    %426 = vmatprep.mubr.f32.mxu0 0.0
    %427 = vmatmul.mubr.f32.gmra.mrb[0].mxu0 %v261
    %v428 = vpop.f32.mrb[0].mxu0
    %v429 = vadd.f32 %v345, %v428
    %v430 = vpop.f32.mrb[0].mxu0
    %431 = vmatprep.mubr.f32.mxu0 0.0
    %432 = vmatmul.mubr.f32.gmra.mrb[0].mxu0 %v266
    %v433 = vpop.f32.mrb[0].mxu0
    %v434 = vadd.f32 %v345, %v433
    %v435 = vpop.f32.mrb[0].mxu0
    %436 = vmatprep.mubr.f32.mxu0 0.0
    %437 = vmatmul.mubr.f32.gmra.mrb[0].mxu0 %v271
    %v438 = vpop.f32.mrb[0].mxu0
    %v439 = vadd.f32 %v345, %v438
    %v440 = vpop.f32.mrb[0].mxu0
    %441 = vmatprep.mubr.f32.mxu0 0.0
    %442 = vmatmul.mubr.f32.gmra.mrb[0].mxu0 %v276
    %v443 = vpop.f32.mrb[0].mxu0
    %v444 = vadd.f32 %v345, %v443
    %v445 = vpop.f32.mrb[0].mxu0
    %446 = vmatprep.mubr.f32.mxu0 0.0
    %447 = vmatmul.mubr.f32.gmra.mrb[0].mxu0 %v281
    %v448 = vpop.f32.mrb[0].mxu0
    %v449 = vadd.f32 %v345, %v448
    %v450 = vpop.f32.mrb[0].mxu0
    %451 = vmatprep.mubr.f32.mxu0 0.0
    %452 = vmatmul.mubr.f32.gmra.mrb[0].mxu0 %v286
    %v453 = vpop.f32.mrb[0].mxu0
    %v454 = vadd.f32 %v345, %v453
    %v455 = vpop.f32.mrb[0].mxu0
    %456 = vmatprep.mubr.f32.mxu0 0.0
    %457 = vmatmul.mubr.f32.gmra.mrb[0].mxu0 %v291
    %v458 = vpop.f32.mrb[0].mxu0
    %v459 = vadd.f32 %v345, %v458
    %v460 = vpop.f32.mrb[0].mxu0
    %461 = vmatprep.mubr.f32.mxu0 0.0
    %462 = vmatmul.mubr.f32.gmra.mrb[0].mxu0 %v296
    %v463 = vpop.f32.mrb[0].mxu0
    %v464 = vadd.f32 %v345, %v463
    %v465 = vpop.f32.mrb[0].mxu0
    %466 = vmatprep.mubr.f32.mxu0 0.0
    %467 = vmatmul.mubr.f32.gmra.mrb[0].mxu0 %v301
    %v468 = vpop.f32.mrb[0].mxu0
    %v469 = vadd.f32 %v345, %v468
    %v470 = vpop.f32.mrb[0].mxu0
    %471 = vmatprep.mubr.f32.mxu0 0.0
    %472 = vmatmul.mubr.f32.gmra.mrb[0].mxu0 %v306
    %v473 = vpop.f32.mrb[0].mxu0
    %v474 = vadd.f32 %v345, %v473
    %v475 = vpop.f32.mrb[0].mxu0
    %476 = vmatprep.mubr.f32.mxu0 0.0
    %477 = vmatmul.mubr.f32.gmra.mrb[0].mxu0 %v311
    %v478 = vpop.f32.mrb[0].mxu0
    %v479 = vadd.f32 %v345, %v478
    %v480 = vpop.f32.mrb[0].mxu0
    %481 = vmatprep.mubr.f32.mxu0 0.0
    %482 = vmatmul.mubr.f32.gmra.mrb[0].mxu0 %v316
    %v483 = vpop.f32.mrb[0].mxu0
    %v484 = vadd.f32 %v345, %v483
    %v485 = vpop.f32.mrb[0].mxu0
    %486 = vmatprep.mubr.f32.mxu0 0.0
    %487 = vmatmul.mubr.f32.gmra.mrb[0].mxu0 %v321
    %v488 = vpop.f32.mrb[0].mxu0
    %v489 = vadd.f32 %v345, %v488
    %v490 = vpop.f32.mrb[0].mxu0
    %491 = vdwg.mxu0
    %v492 = vmax.f32 %v414, 0.0
    %v493 = vmax.f32 %v419, 0.0
    %v494 = vmax.f32 %v424, 0.0
    %v495 = vmax.f32 %v429, 0.0
    %v496 = vmax.f32 %v434, 0.0
    %v497 = vmax.f32 %v439, 0.0
    %v498 = vmax.f32 %v444, 0.0
    %v499 = vmax.f32 %v449, 0.0
    %v500 = vmax.f32 %v454, 0.0
    %v501 = vmax.f32 %v459, 0.0
    %v502 = vmax.f32 %v464, 0.0
    %v503 = vmax.f32 %v469, 0.0
    %v504 = vmax.f32 %v474, 0.0
    %v505 = vmax.f32 %v479, 0.0
    %v506 = vmax.f32 %v484, 0.0
    %v507 = vmax.f32 %v489, 0.0
    %v508 = vld [vmem:[#allocation10] sm:$0xff]
    %v509 = vld [vmem:[#allocation10 + $0x8] sm:$0xff]
    %v510 = vld [vmem:[#allocation10 + $0x10] sm:$0xff]
    %v511 = vld [vmem:[#allocation10 + $0x18] sm:$0xff]
    %v512 = vld [vmem:[#allocation10 + $0x20] sm:$0xff]
    %v513 = vld [vmem:[#allocation10 + $0x28] sm:$0xff]
    %v514 = vld [vmem:[#allocation10 + $0x30] sm:$0xff]
    %v515 = vld [vmem:[#allocation10 + $0x38] sm:$0xff]
    %v516 = vld [vmem:[#allocation10 + $0x40] sm:$0xff]
    %v517 = vld [vmem:[#allocation10 + $0x48] sm:$0xff]
    %v518 = vld [vmem:[#allocation10 + $0x50] sm:$0xff]
    %v519 = vld [vmem:[#allocation10 + $0x58] sm:$0xff]
    %v520 = vld [vmem:[#allocation10 + $0x60] sm:$0xff]
    %v521 = vld [vmem:[#allocation10 + $0x68] sm:$0xff]
    %v522 = vld [vmem:[#allocation10 + $0x70] sm:$0xff]
    %v523 = vld [vmem:[#allocation10 + $0x78] sm:$0xff]
    %v524 = vld [vmem:[%s6] sm:$0x1]
    %v526 = vlaneseq
    %v527 = vshrl.u32 %v526, 7
    %v528 = vsub.s32 0, %v527
    %v529 = vrot.slane %v524, %v528
    %531 = vmatprep.subr.mxu0 0.0
    %532 = vmatpush1.msra.mxu0 %v508
    %533 = vmatprep.subr.mxu0 0.0
    %534 = vmatpush1.msra.mxu0 %v509
    %535 = vmatprep.subr.mxu0 0.0
    %536 = vmatpush1.msra.mxu0 %v510
    %537 = vmatprep.subr.mxu0 0.0
    %538 = vmatpush1.msra.mxu0 %v511
    %539 = vmatprep.subr.mxu0 0.0
    %540 = vmatpush1.msra.mxu0 %v512
    %541 = vmatprep.subr.mxu0 0.0
    %542 = vmatpush1.msra.mxu0 %v513
    %543 = vmatprep.subr.mxu0 0.0
    %544 = vmatpush1.msra.mxu0 %v514
    %545 = vmatprep.subr.mxu0 0.0
    %546 = vmatpush1.msra.mxu0 %v515
    %547 = vmatprep.subr.mxu0 0.0
    %548 = vmatpush1.msra.mxu0 %v516
    %549 = vmatprep.subr.mxu0 0.0
    %550 = vmatpush1.msra.mxu0 %v517
    %551 = vmatprep.subr.mxu0 0.0
    %552 = vmatpush1.msra.mxu0 %v518
    %553 = vmatprep.subr.mxu0 0.0
    %554 = vmatpush1.msra.mxu0 %v519
    %555 = vmatprep.subr.mxu0 0.0
    %556 = vmatpush1.msra.mxu0 %v520
    %557 = vmatprep.subr.mxu0 0.0
    %558 = vmatpush1.msra.mxu0 %v521
    %559 = vmatprep.subr.mxu0 0.0
    %560 = vmatpush1.msra.mxu0 %v522
    %561 = vmatprep.subr.mxu0 0.0
    %562 = vmatpush1.msra.mxu0 %v523
    %563 = vmatprep.subr.mxu0 0.0
    %564 = vmatpush1.msra.mxu0 0.0
    %565 = vmatprep.subr.mxu0 0.0
    %566 = vmatpush1.msra.mxu0 0.0
    %567 = vmatprep.subr.mxu0 0.0
    %568 = vmatpush1.msra.mxu0 0.0
    %569 = vmatprep.subr.mxu0 0.0
    %570 = vmatpush1.msra.mxu0 0.0
    %571 = vmatprep.subr.mxu0 0.0
    %572 = vmatpush1.msra.mxu0 0.0
    %573 = vmatprep.subr.mxu0 0.0
    %574 = vmatpush1.msra.mxu0 0.0
    %575 = vmatprep.subr.mxu0 0.0
    %576 = vmatpush1.msra.mxu0 0.0
    %577 = vmatprep.subr.mxu0 0.0
    %578 = vmatpush1.msra.mxu0 0.0
    %579 = vmatprep.subr.mxu0 0.0
    %580 = vmatpush1.msra.mxu0 0.0
    %581 = vmatprep.subr.mxu0 0.0
    %582 = vmatpush1.msra.mxu0 0.0
    %583 = vmatprep.subr.mxu0 0.0
    %584 = vmatpush1.msra.mxu0 0.0
    %585 = vmatprep.subr.mxu0 0.0
    %586 = vmatpush1.msra.mxu0 0.0
    %587 = vmatprep.subr.mxu0 0.0
    %588 = vmatpush1.msra.mxu0 0.0
    %589 = vmatprep.subr.mxu0 0.0
    %590 = vmatpush1.msra.mxu0 0.0
    %591 = vmatprep.subr.mxu0 0.0
    %592 = vmatpush1.msra.mxu0 0.0
    %593 = vmatprep.subr.mxu0 0.0
    %594 = vmatpush1.msra.mxu0 0.0
    %595 = vmatprep.mubr.f32.mxu0 0.0
    %596 = vmatmul.mubr.f32.gmra.mrb[0].mxu0 %v492
    %v597 = vpop.f32.mrb[0].mxu0
    %v598 = vadd.f32 %v529, %v597
    %v599 = vpop.f32.mrb[0].mxu0
    %600 = vmatprep.mubr.f32.mxu0 0.0
    %601 = vmatmul.mubr.f32.gmra.mrb[0].mxu0 %v493
    %v602 = vpop.f32.mrb[0].mxu0
    %v603 = vadd.f32 %v529, %v602
    %v604 = vpop.f32.mrb[0].mxu0
    %605 = vmatprep.mubr.f32.mxu0 0.0
    %606 = vmatmul.mubr.f32.gmra.mrb[0].mxu0 %v494
    %v607 = vpop.f32.mrb[0].mxu0
    %v608 = vadd.f32 %v529, %v607
    %v609 = vpop.f32.mrb[0].mxu0
    %610 = vmatprep.mubr.f32.mxu0 0.0
    %611 = vmatmul.mubr.f32.gmra.mrb[0].mxu0 %v495
    %v612 = vpop.f32.mrb[0].mxu0
    %v613 = vadd.f32 %v529, %v612
    %v614 = vpop.f32.mrb[0].mxu0
    %615 = vmatprep.mubr.f32.mxu0 0.0
    %616 = vmatmul.mubr.f32.gmra.mrb[0].mxu0 %v496
    %v617 = vpop.f32.mrb[0].mxu0
    %v618 = vadd.f32 %v529, %v617
    %v619 = vpop.f32.mrb[0].mxu0
    %620 = vmatprep.mubr.f32.mxu0 0.0
    %621 = vmatmul.mubr.f32.gmra.mrb[0].mxu0 %v497
    %v622 = vpop.f32.mrb[0].mxu0
    %v623 = vadd.f32 %v529, %v622
    %v624 = vpop.f32.mrb[0].mxu0
    %625 = vmatprep.mubr.f32.mxu0 0.0
    %626 = vmatmul.mubr.f32.gmra.mrb[0].mxu0 %v498
    %v627 = vpop.f32.mrb[0].mxu0
    %v628 = vadd.f32 %v529, %v627
    %v629 = vpop.f32.mrb[0].mxu0
    %630 = vmatprep.mubr.f32.mxu0 0.0
    %631 = vmatmul.mubr.f32.gmra.mrb[0].mxu0 %v499
    %v632 = vpop.f32.mrb[0].mxu0
    %v633 = vadd.f32 %v529, %v632
    %v634 = vpop.f32.mrb[0].mxu0
    %635 = vmatprep.mubr.f32.mxu0 0.0
    %636 = vmatmul.mubr.f32.gmra.mrb[0].mxu0 %v500
    %v637 = vpop.f32.mrb[0].mxu0
    %v638 = vadd.f32 %v529, %v637
    %v639 = vpop.f32.mrb[0].mxu0
    %640 = vmatprep.mubr.f32.mxu0 0.0
    %641 = vmatmul.mubr.f32.gmra.mrb[0].mxu0 %v501
    %v642 = vpop.f32.mrb[0].mxu0
    %v643 = vadd.f32 %v529, %v642
    %v644 = vpop.f32.mrb[0].mxu0
    %645 = vmatprep.mubr.f32.mxu0 0.0
    %646 = vmatmul.mubr.f32.gmra.mrb[0].mxu0 %v502
    %v647 = vpop.f32.mrb[0].mxu0
    %v648 = vadd.f32 %v529, %v647
    %v649 = vpop.f32.mrb[0].mxu0
    %650 = vmatprep.mubr.f32.mxu0 0.0
    %651 = vmatmul.mubr.f32.gmra.mrb[0].mxu0 %v503
    %v652 = vpop.f32.mrb[0].mxu0
    %v653 = vadd.f32 %v529, %v652
    %v654 = vpop.f32.mrb[0].mxu0
    %655 = vmatprep.mubr.f32.mxu0 0.0
    %656 = vmatmul.mubr.f32.gmra.mrb[0].mxu0 %v504
    %v657 = vpop.f32.mrb[0].mxu0
    %v658 = vadd.f32 %v529, %v657
    %v659 = vpop.f32.mrb[0].mxu0
    %660 = vmatprep.mubr.f32.mxu0 0.0
    %661 = vmatmul.mubr.f32.gmra.mrb[0].mxu0 %v505
    %v662 = vpop.f32.mrb[0].mxu0
    %v663 = vadd.f32 %v529, %v662
    %v664 = vpop.f32.mrb[0].mxu0
    %665 = vmatprep.mubr.f32.mxu0 0.0
    %666 = vmatmul.mubr.f32.gmra.mrb[0].mxu0 %v506
    %v667 = vpop.f32.mrb[0].mxu0
    %v668 = vadd.f32 %v529, %v667
    %v669 = vpop.f32.mrb[0].mxu0
    %670 = vmatprep.mubr.f32.mxu0 0.0
    %671 = vmatmul.mubr.f32.gmra.mrb[0].mxu0 %v507
    %v672 = vpop.f32.mrb[0].mxu0
    %v673 = vadd.f32 %v529, %v672
    %v674 = vpop.f32.mrb[0].mxu0
    %675 = vdwg.mxu0
    %s676 = scalar_lea.vmem [#allocation12], 128
    %v677 = vld [vmem:[%s676] sm:$0xff]
    %v678 = vld [vmem:[%s676 + $0x8] sm:$0xff]
    %v679 = vld [vmem:[%s676 + $0x10] sm:$0xff]
    %v680 = vld [vmem:[%s676 + $0x18] sm:$0xff]
    %v681 = vld [vmem:[%s676 + $0x20] sm:$0xff]
    %v682 = vld [vmem:[%s676 + $0x28] sm:$0xff]
    %v683 = vld [vmem:[%s676 + $0x30] sm:$0xff]
    %v684 = vld [vmem:[%s676 + $0x38] sm:$0xff]
    %v685 = vld [vmem:[%s676 + $0x40] sm:$0xff]
    %v686 = vld [vmem:[%s676 + $0x48] sm:$0xff]
    %v687 = vld [vmem:[%s676 + $0x50] sm:$0xff]
    %v688 = vld [vmem:[%s676 + $0x58] sm:$0xff]
    %v689 = vld [vmem:[%s676 + $0x60] sm:$0xff]
    %v690 = vld [vmem:[%s676 + $0x68] sm:$0xff]
    %v691 = vld [vmem:[%s676 + $0x70] sm:$0xff]
    %v692 = vld [vmem:[%s676 + $0x78] sm:$0xff]
    %693 = vmatprep.subr.mxu0 0.0
    %694 = vmatpush1.msra.mxu0 %v677
    %695 = vmatprep.subr.mxu0 0.0
    %696 = vmatpush1.msra.mxu0 %v678
    %697 = vmatprep.subr.mxu0 0.0
    %698 = vmatpush1.msra.mxu0 %v679
    %699 = vmatprep.subr.mxu0 0.0
    %700 = vmatpush1.msra.mxu0 %v680
    %701 = vmatprep.subr.mxu0 0.0
    %702 = vmatpush1.msra.mxu0 %v681
    %703 = vmatprep.subr.mxu0 0.0
    %704 = vmatpush1.msra.mxu0 %v682
    %705 = vmatprep.subr.mxu0 0.0
    %706 = vmatpush1.msra.mxu0 %v683
    %707 = vmatprep.subr.mxu0 0.0
    %708 = vmatpush1.msra.mxu0 %v684
    %709 = vmatprep.subr.mxu0 0.0
    %710 = vmatpush1.msra.mxu0 %v685
    %711 = vmatprep.subr.mxu0 0.0
    %712 = vmatpush1.msra.mxu0 %v686
    %713 = vmatprep.subr.mxu0 0.0
    %714 = vmatpush1.msra.mxu0 %v687
    %715 = vmatprep.subr.mxu0 0.0
    %716 = vmatpush1.msra.mxu0 %v688
    %717 = vmatprep.subr.mxu0 0.0
    %718 = vmatpush1.msra.mxu0 %v689
    %719 = vmatprep.subr.mxu0 0.0
    %720 = vmatpush1.msra.mxu0 %v690
    %721 = vmatprep.subr.mxu0 0.0
    %722 = vmatpush1.msra.mxu0 %v691
    %723 = vmatprep.subr.mxu0 0.0
    %724 = vmatpush1.msra.mxu0 %v692
    %725 = vmatprep.subr.mxu0 0.0
    %726 = vmatpush1.msra.mxu0 0.0
    %727 = vmatprep.subr.mxu0 0.0
    %728 = vmatpush1.msra.mxu0 0.0
    %729 = vmatprep.subr.mxu0 0.0
    %730 = vmatpush1.msra.mxu0 0.0
    %731 = vmatprep.subr.mxu0 0.0
    %732 = vmatpush1.msra.mxu0 0.0
    %733 = vmatprep.subr.mxu0 0.0
    %734 = vmatpush1.msra.mxu0 0.0
    %735 = vmatprep.subr.mxu0 0.0
    %736 = vmatpush1.msra.mxu0 0.0
    %737 = vmatprep.subr.mxu0 0.0
    %738 = vmatpush1.msra.mxu0 0.0
    %739 = vmatprep.subr.mxu0 0.0
    %740 = vmatpush1.msra.mxu0 0.0
    %741 = vmatprep.subr.mxu0 0.0
    %742 = vmatpush1.msra.mxu0 0.0
    %743 = vmatprep.subr.mxu0 0.0
    %744 = vmatpush1.msra.mxu0 0.0
    %745 = vmatprep.subr.mxu0 0.0
    %746 = vmatpush1.msra.mxu0 0.0
    %747 = vmatprep.subr.mxu0 0.0
    %748 = vmatpush1.msra.mxu0 0.0
    %749 = vmatprep.subr.mxu0 0.0
    %750 = vmatpush1.msra.mxu0 0.0
    %751 = vmatprep.subr.mxu0 0.0
    %752 = vmatpush1.msra.mxu0 0.0
    %753 = vmatprep.subr.mxu0 0.0
    %754 = vmatpush1.msra.mxu0 0.0
    %755 = vmatprep.subr.mxu0 0.0
    %756 = vmatpush1.msra.mxu0 0.0
    %757 = vmatprep.mubr.f32.mxu0 0.0
    %758 = vmatmul.mubr.f32.gmra.mrb[0].mxu0 %v598
    %v759 = vpop.f32.mrb[0].mxu0
    %v760 = vadd.f32 0.0, %v759
    %v761 = vpop.f32.mrb[0].mxu0
    %762 = vmatprep.mubr.f32.mxu0 0.0
    %763 = vmatmul.mubr.f32.gmra.mrb[0].mxu0 %v603
    %v764 = vpop.f32.mrb[0].mxu0
    %v765 = vadd.f32 0.0, %v764
    %v766 = vpop.f32.mrb[0].mxu0
    %767 = vmatprep.mubr.f32.mxu0 0.0
    %768 = vmatmul.mubr.f32.gmra.mrb[0].mxu0 %v608
    %v769 = vpop.f32.mrb[0].mxu0
    %v770 = vadd.f32 0.0, %v769
    %v771 = vpop.f32.mrb[0].mxu0
    %772 = vmatprep.mubr.f32.mxu0 0.0
    %773 = vmatmul.mubr.f32.gmra.mrb[0].mxu0 %v613
    %v774 = vpop.f32.mrb[0].mxu0
    %v775 = vadd.f32 0.0, %v774
    %v776 = vpop.f32.mrb[0].mxu0
    %777 = vmatprep.mubr.f32.mxu0 0.0
    %778 = vmatmul.mubr.f32.gmra.mrb[0].mxu0 %v618
    %v779 = vpop.f32.mrb[0].mxu0
    %v780 = vadd.f32 0.0, %v779
    %v781 = vpop.f32.mrb[0].mxu0
    %782 = vmatprep.mubr.f32.mxu0 0.0
    %783 = vmatmul.mubr.f32.gmra.mrb[0].mxu0 %v623
    %v784 = vpop.f32.mrb[0].mxu0
    %v785 = vadd.f32 0.0, %v784
    %v786 = vpop.f32.mrb[0].mxu0
    %787 = vmatprep.mubr.f32.mxu0 0.0
    %788 = vmatmul.mubr.f32.gmra.mrb[0].mxu0 %v628
    %v789 = vpop.f32.mrb[0].mxu0
    %v790 = vadd.f32 0.0, %v789
    %v791 = vpop.f32.mrb[0].mxu0
    %792 = vmatprep.mubr.f32.mxu0 0.0
    %793 = vmatmul.mubr.f32.gmra.mrb[0].mxu0 %v633
    %v794 = vpop.f32.mrb[0].mxu0
    %v795 = vadd.f32 0.0, %v794
    %v796 = vpop.f32.mrb[0].mxu0
    %797 = vmatprep.mubr.f32.mxu0 0.0
    %798 = vmatmul.mubr.f32.gmra.mrb[0].mxu0 %v638
    %v799 = vpop.f32.mrb[0].mxu0
    %v800 = vadd.f32 0.0, %v799
    %v801 = vpop.f32.mrb[0].mxu0
    %802 = vmatprep.mubr.f32.mxu0 0.0
    %803 = vmatmul.mubr.f32.gmra.mrb[0].mxu0 %v643
    %v804 = vpop.f32.mrb[0].mxu0
    %v805 = vadd.f32 0.0, %v804
    %v806 = vpop.f32.mrb[0].mxu0
    %807 = vmatprep.mubr.f32.mxu0 0.0
    %808 = vmatmul.mubr.f32.gmra.mrb[0].mxu0 %v648
    %v809 = vpop.f32.mrb[0].mxu0
    %v810 = vadd.f32 0.0, %v809
    %v811 = vpop.f32.mrb[0].mxu0
    %812 = vmatprep.mubr.f32.mxu0 0.0
    %813 = vmatmul.mubr.f32.gmra.mrb[0].mxu0 %v653
    %v814 = vpop.f32.mrb[0].mxu0
    %v815 = vadd.f32 0.0, %v814
    %v816 = vpop.f32.mrb[0].mxu0
    %817 = vmatprep.mubr.f32.mxu0 0.0
    %818 = vmatmul.mubr.f32.gmra.mrb[0].mxu0 %v658
    %v819 = vpop.f32.mrb[0].mxu0
    %v820 = vadd.f32 0.0, %v819
    %v821 = vpop.f32.mrb[0].mxu0
    %822 = vmatprep.mubr.f32.mxu0 0.0
    %823 = vmatmul.mubr.f32.gmra.mrb[0].mxu0 %v663
    %v824 = vpop.f32.mrb[0].mxu0
    %v825 = vadd.f32 0.0, %v824
    %v826 = vpop.f32.mrb[0].mxu0
    %827 = vmatprep.mubr.f32.mxu0 0.0
    %828 = vmatmul.mubr.f32.gmra.mrb[0].mxu0 %v668
    %v829 = vpop.f32.mrb[0].mxu0
    %v830 = vadd.f32 0.0, %v829
    %v831 = vpop.f32.mrb[0].mxu0
    %832 = vmatprep.mubr.f32.mxu0 0.0
    %833 = vmatmul.mubr.f32.gmra.mrb[0].mxu0 %v673
    %v834 = vpop.f32.mrb[0].mxu0
    %v835 = vadd.f32 0.0, %v834
    %v836 = vpop.f32.mrb[0].mxu0
    %837 = vdwg.mxu0
    %838 = vmatprep.subr.mxu0 0.0
    %839 = vmatpush1.msra.mxu0 %v144
    %840 = vmatprep.subr.mxu0 0.0
    %841 = vmatpush1.msra.mxu0 %v145
    %842 = vmatprep.subr.mxu0 0.0
    %843 = vmatpush1.msra.mxu0 %v146
    %844 = vmatprep.subr.mxu0 0.0
    %845 = vmatpush1.msra.mxu0 %v147
    %846 = vmatprep.subr.mxu0 0.0
    %847 = vmatpush1.msra.mxu0 %v148
    %848 = vmatprep.subr.mxu0 0.0
    %849 = vmatpush1.msra.mxu0 %v149
    %850 = vmatprep.subr.mxu0 0.0
    %851 = vmatpush1.msra.mxu0 %v150
    %852 = vmatprep.subr.mxu0 0.0
    %853 = vmatpush1.msra.mxu0 %v151
    %854 = vmatprep.subr.mxu0 0.0
    %855 = vmatpush1.msra.mxu0 %v152
    %856 = vmatprep.subr.mxu0 0.0
    %857 = vmatpush1.msra.mxu0 %v153
    %858 = vmatprep.subr.mxu0 0.0
    %859 = vmatpush1.msra.mxu0 %v154
    %860 = vmatprep.subr.mxu0 0.0
    %861 = vmatpush1.msra.mxu0 %v155
    %862 = vmatprep.subr.mxu0 0.0
    %863 = vmatpush1.msra.mxu0 %v156
    %864 = vmatprep.subr.mxu0 0.0
    %865 = vmatpush1.msra.mxu0 %v157
    %866 = vmatprep.subr.mxu0 0.0
    %867 = vmatpush1.msra.mxu0 %v158
    %868 = vmatprep.subr.mxu0 0.0
    %869 = vmatpush1.msra.mxu0 %v159
    %870 = vmatprep.subr.mxu0 0.0
    %871 = vmatpush1.msra.mxu0 0.0
    %872 = vmatprep.subr.mxu0 0.0
    %873 = vmatpush1.msra.mxu0 0.0
    %874 = vmatprep.subr.mxu0 0.0
    %875 = vmatpush1.msra.mxu0 0.0
    %876 = vmatprep.subr.mxu0 0.0
    %877 = vmatpush1.msra.mxu0 0.0
    %878 = vmatprep.subr.mxu0 0.0
    %879 = vmatpush1.msra.mxu0 0.0
    %880 = vmatprep.subr.mxu0 0.0
    %881 = vmatpush1.msra.mxu0 0.0
    %882 = vmatprep.subr.mxu0 0.0
    %883 = vmatpush1.msra.mxu0 0.0
    %884 = vmatprep.subr.mxu0 0.0
    %885 = vmatpush1.msra.mxu0 0.0
    %886 = vmatprep.subr.mxu0 0.0
    %887 = vmatpush1.msra.mxu0 0.0
    %888 = vmatprep.subr.mxu0 0.0
    %889 = vmatpush1.msra.mxu0 0.0
    %890 = vmatprep.subr.mxu0 0.0
    %891 = vmatpush1.msra.mxu0 0.0
    %892 = vmatprep.subr.mxu0 0.0
    %893 = vmatpush1.msra.mxu0 0.0
    %894 = vmatprep.subr.mxu0 0.0
    %895 = vmatpush1.msra.mxu0 0.0
    %896 = vmatprep.subr.mxu0 0.0
    %897 = vmatpush1.msra.mxu0 0.0
    %898 = vmatprep.subr.mxu0 0.0
    %899 = vmatpush1.msra.mxu0 0.0
    %900 = vmatprep.subr.mxu0 0.0
    %901 = vmatpush1.msra.mxu0 0.0
    %902 = vmatprep.mubr.f32.mxu0 0.0
    %903 = vmatmul.mubr.f32.gmra.mrb[0].mxu0 %v128
    %v904 = vpop.f32.mrb[0].mxu0
    %v905 = vadd.f32 %v760, %v904
    %v906 = vpop.f32.mrb[0].mxu0
    %907 = vmatprep.mubr.f32.mxu0 0.0
    %908 = vmatmul.mubr.f32.gmra.mrb[0].mxu0 %v129
    %v909 = vpop.f32.mrb[0].mxu0
    %v910 = vadd.f32 %v765, %v909
    %v911 = vpop.f32.mrb[0].mxu0
    %912 = vmatprep.mubr.f32.mxu0 0.0
    %913 = vmatmul.mubr.f32.gmra.mrb[0].mxu0 %v130
    %v914 = vpop.f32.mrb[0].mxu0
    %v915 = vadd.f32 %v770, %v914
    %v916 = vpop.f32.mrb[0].mxu0
    %917 = vmatprep.mubr.f32.mxu0 0.0
    %918 = vmatmul.mubr.f32.gmra.mrb[0].mxu0 %v131
    %v919 = vpop.f32.mrb[0].mxu0
    %v920 = vadd.f32 %v775, %v919
    %v921 = vpop.f32.mrb[0].mxu0
    %922 = vmatprep.mubr.f32.mxu0 0.0
    %923 = vmatmul.mubr.f32.gmra.mrb[0].mxu0 %v132
    %v924 = vpop.f32.mrb[0].mxu0
    %v925 = vadd.f32 %v780, %v924
    %v926 = vpop.f32.mrb[0].mxu0
    %927 = vmatprep.mubr.f32.mxu0 0.0
    %928 = vmatmul.mubr.f32.gmra.mrb[0].mxu0 %v133
    %v929 = vpop.f32.mrb[0].mxu0
    %v930 = vadd.f32 %v785, %v929
    %v931 = vpop.f32.mrb[0].mxu0
    %932 = vmatprep.mubr.f32.mxu0 0.0
    %933 = vmatmul.mubr.f32.gmra.mrb[0].mxu0 %v134
    %v934 = vpop.f32.mrb[0].mxu0
    %v935 = vadd.f32 %v790, %v934
    %v936 = vpop.f32.mrb[0].mxu0
    %937 = vmatprep.mubr.f32.mxu0 0.0
    %938 = vmatmul.mubr.f32.gmra.mrb[0].mxu0 %v135
    %v939 = vpop.f32.mrb[0].mxu0
    %v940 = vadd.f32 %v795, %v939
    %v941 = vpop.f32.mrb[0].mxu0
    %942 = vmatprep.mubr.f32.mxu0 0.0
    %943 = vmatmul.mubr.f32.gmra.mrb[0].mxu0 %v136
    %v944 = vpop.f32.mrb[0].mxu0
    %v945 = vadd.f32 %v800, %v944
    %v946 = vpop.f32.mrb[0].mxu0
    %947 = vmatprep.mubr.f32.mxu0 0.0
    %948 = vmatmul.mubr.f32.gmra.mrb[0].mxu0 %v137
    %v949 = vpop.f32.mrb[0].mxu0
    %v950 = vadd.f32 %v805, %v949
    %v951 = vpop.f32.mrb[0].mxu0
    %952 = vmatprep.mubr.f32.mxu0 0.0
    %953 = vmatmul.mubr.f32.gmra.mrb[0].mxu0 %v138
    %v954 = vpop.f32.mrb[0].mxu0
    %v955 = vadd.f32 %v810, %v954
    %v956 = vpop.f32.mrb[0].mxu0
    %957 = vmatprep.mubr.f32.mxu0 0.0
    %958 = vmatmul.mubr.f32.gmra.mrb[0].mxu0 %v139
    %v959 = vpop.f32.mrb[0].mxu0
    %v960 = vadd.f32 %v815, %v959
    %v961 = vpop.f32.mrb[0].mxu0
    %962 = vmatprep.mubr.f32.mxu0 0.0
    %963 = vmatmul.mubr.f32.gmra.mrb[0].mxu0 %v140
    %v964 = vpop.f32.mrb[0].mxu0
    %v965 = vadd.f32 %v820, %v964
    %v966 = vpop.f32.mrb[0].mxu0
    %967 = vmatprep.mubr.f32.mxu0 0.0
    %968 = vmatmul.mubr.f32.gmra.mrb[0].mxu0 %v141
    %v969 = vpop.f32.mrb[0].mxu0
    %v970 = vadd.f32 %v825, %v969
    %v971 = vpop.f32.mrb[0].mxu0
    %972 = vmatprep.mubr.f32.mxu0 0.0
    %973 = vmatmul.mubr.f32.gmra.mrb[0].mxu0 %v142
    %v974 = vpop.f32.mrb[0].mxu0
    %v975 = vadd.f32 %v830, %v974
    %v976 = vpop.f32.mrb[0].mxu0
    %977 = vmatprep.mubr.f32.mxu0 0.0
    %978 = vmatmul.mubr.f32.gmra.mrb[0].mxu0 %v143
    %v979 = vpop.f32.mrb[0].mxu0
    %v980 = vadd.f32 %v835, %v979
    %v981 = vpop.f32.mrb[0].mxu0
    %982 = vdwg.mxu0
    %s983 = sld [smem:[#allocation2 + $0x1]]
    %s984 = sadd.f32 %s983, 1.0
    %v985 = vstv %s984
    %v986 = vmul.f32 %v985, %v598
    %v987 = vmul.f32 %v985, %v603
    %v988 = vmul.f32 %v985, %v608
    %v989 = vmul.f32 %v985, %v613
    %v990 = vmul.f32 %v985, %v618
    %v991 = vmul.f32 %v985, %v623
    %v992 = vmul.f32 %v985, %v628
    %v993 = vmul.f32 %v985, %v633
    %v994 = vmul.f32 %v985, %v638
    %v995 = vmul.f32 %v985, %v643
    %v996 = vmul.f32 %v985, %v648
    %v997 = vmul.f32 %v985, %v653
    %v998 = vmul.f32 %v985, %v658
    %v999 = vmul.f32 %v985, %v663
    %v1000 = vmul.f32 %v985, %v668
    %v1001 = vmul.f32 %v985, %v673
    %1002 = vmatprep.subr.mxu0 0.0
    %1003 = vmatpush1.msra.mxu0 %v598
    %1004 = vmatprep.subr.mxu0 0.0
    %1005 = vmatpush1.msra.mxu0 %v603
    %1006 = vmatprep.subr.mxu0 0.0
    %1007 = vmatpush1.msra.mxu0 %v608
    %1008 = vmatprep.subr.mxu0 0.0
    %1009 = vmatpush1.msra.mxu0 %v613
    %1010 = vmatprep.subr.mxu0 0.0
    %1011 = vmatpush1.msra.mxu0 %v618
    %1012 = vmatprep.subr.mxu0 0.0
    %1013 = vmatpush1.msra.mxu0 %v623
    %1014 = vmatprep.subr.mxu0 0.0
    %1015 = vmatpush1.msra.mxu0 %v628
    %1016 = vmatprep.subr.mxu0 0.0
    %1017 = vmatpush1.msra.mxu0 %v633
    %1018 = vmatprep.subr.mxu0 0.0
    %1019 = vmatpush1.msra.mxu0 %v638
    %1020 = vmatprep.subr.mxu0 0.0
    %1021 = vmatpush1.msra.mxu0 %v643
    %1022 = vmatprep.subr.mxu0 0.0
    %1023 = vmatpush1.msra.mxu0 %v648
    %1024 = vmatprep.subr.mxu0 0.0
    %1025 = vmatpush1.msra.mxu0 %v653
    %1026 = vmatprep.subr.mxu0 0.0
    %1027 = vmatpush1.msra.mxu0 %v658
    %1028 = vmatprep.subr.mxu0 0.0
    %1029 = vmatpush1.msra.mxu0 %v663
    %1030 = vmatprep.subr.mxu0 0.0
    %1031 = vmatpush1.msra.mxu0 %v668
    %1032 = vmatprep.subr.mxu0 0.0
    %1033 = vmatpush1.msra.mxu0 %v673
    %1034 = vmatprep.subr.mxu0 0.0
    %1035 = vmatpush1.msra.mxu0 0.0
    %1036 = vmatprep.subr.mxu0 0.0
    %1037 = vmatpush1.msra.mxu0 0.0
    %1038 = vmatprep.subr.mxu0 0.0
    %1039 = vmatpush1.msra.mxu0 0.0
    %1040 = vmatprep.subr.mxu0 0.0
    %1041 = vmatpush1.msra.mxu0 0.0
    %1042 = vmatprep.subr.mxu0 0.0
    %1043 = vmatpush1.msra.mxu0 0.0
    %1044 = vmatprep.subr.mxu0 0.0
    %1045 = vmatpush1.msra.mxu0 0.0
    %1046 = vmatprep.subr.mxu0 0.0
    %1047 = vmatpush1.msra.mxu0 0.0
    %1048 = vmatprep.subr.mxu0 0.0
    %1049 = vmatpush1.msra.mxu0 0.0
    %1050 = vmatprep.subr.mxu0 0.0
    %1051 = vmatpush1.msra.mxu0 0.0
    %1052 = vmatprep.subr.mxu0 0.0
    %1053 = vmatpush1.msra.mxu0 0.0
    %1054 = vmatprep.subr.mxu0 0.0
    %1055 = vmatpush1.msra.mxu0 0.0
    %1056 = vmatprep.subr.mxu0 0.0
    %1057 = vmatpush1.msra.mxu0 0.0
    %1058 = vmatprep.subr.mxu0 0.0
    %1059 = vmatpush1.msra.mxu0 0.0
    %1060 = vmatprep.subr.mxu0 0.0
    %1061 = vmatpush1.msra.mxu0 0.0
    %1062 = vmatprep.subr.mxu0 0.0
    %1063 = vmatpush1.msra.mxu0 0.0
    %1064 = vmatprep.subr.mxu0 0.0
    %1065 = vmatpush1.msra.mxu0 0.0
    %1066 = vmatprep.mubr.f32.mxu0 0.0
    %1067 = vmatmul.mubr.f32.gmra.mrb[0].mxu0 %v112
    %v1068 = vpop.f32.mrb[0].mxu0
    %v1069 = vadd.f32 %v986, %v1068
    %v1070 = vpop.f32.mrb[0].mxu0
    %1071 = vmatprep.mubr.f32.mxu0 0.0
    %1072 = vmatmul.mubr.f32.gmra.mrb[0].mxu0 %v113
    %v1073 = vpop.f32.mrb[0].mxu0
    %v1074 = vadd.f32 %v987, %v1073
    %v1075 = vpop.f32.mrb[0].mxu0
    %1076 = vmatprep.mubr.f32.mxu0 0.0
    %1077 = vmatmul.mubr.f32.gmra.mrb[0].mxu0 %v114
    %v1078 = vpop.f32.mrb[0].mxu0
    %v1079 = vadd.f32 %v988, %v1078
    %v1080 = vpop.f32.mrb[0].mxu0
    %1081 = vmatprep.mubr.f32.mxu0 0.0
    %1082 = vmatmul.mubr.f32.gmra.mrb[0].mxu0 %v115
    %v1083 = vpop.f32.mrb[0].mxu0
    %v1084 = vadd.f32 %v989, %v1083
    %v1085 = vpop.f32.mrb[0].mxu0
    %1086 = vmatprep.mubr.f32.mxu0 0.0
    %1087 = vmatmul.mubr.f32.gmra.mrb[0].mxu0 %v116
    %v1088 = vpop.f32.mrb[0].mxu0
    %v1089 = vadd.f32 %v990, %v1088
    %v1090 = vpop.f32.mrb[0].mxu0
    %1091 = vmatprep.mubr.f32.mxu0 0.0
    %1092 = vmatmul.mubr.f32.gmra.mrb[0].mxu0 %v117
    %v1093 = vpop.f32.mrb[0].mxu0
    %v1094 = vadd.f32 %v991, %v1093
    %v1095 = vpop.f32.mrb[0].mxu0
    %1096 = vmatprep.mubr.f32.mxu0 0.0
    %1097 = vmatmul.mubr.f32.gmra.mrb[0].mxu0 %v118
    %v1098 = vpop.f32.mrb[0].mxu0
    %v1099 = vadd.f32 %v992, %v1098
    %v1100 = vpop.f32.mrb[0].mxu0
    %1101 = vmatprep.mubr.f32.mxu0 0.0
    %1102 = vmatmul.mubr.f32.gmra.mrb[0].mxu0 %v119
    %v1103 = vpop.f32.mrb[0].mxu0
    %v1104 = vadd.f32 %v993, %v1103
    %v1105 = vpop.f32.mrb[0].mxu0
    %1106 = vmatprep.mubr.f32.mxu0 0.0
    %1107 = vmatmul.mubr.f32.gmra.mrb[0].mxu0 %v120
    %v1108 = vpop.f32.mrb[0].mxu0
    %v1109 = vadd.f32 %v994, %v1108
    %v1110 = vpop.f32.mrb[0].mxu0
    %1111 = vmatprep.mubr.f32.mxu0 0.0
    %1112 = vmatmul.mubr.f32.gmra.mrb[0].mxu0 %v121
    %v1113 = vpop.f32.mrb[0].mxu0
    %v1114 = vadd.f32 %v995, %v1113
    %v1115 = vpop.f32.mrb[0].mxu0
    %1116 = vmatprep.mubr.f32.mxu0 0.0
    %1117 = vmatmul.mubr.f32.gmra.mrb[0].mxu0 %v122
    %v1118 = vpop.f32.mrb[0].mxu0
    %v1119 = vadd.f32 %v996, %v1118
    %v1120 = vpop.f32.mrb[0].mxu0
    %1121 = vmatprep.mubr.f32.mxu0 0.0
    %1122 = vmatmul.mubr.f32.gmra.mrb[0].mxu0 %v123
    %v1123 = vpop.f32.mrb[0].mxu0
    %v1124 = vadd.f32 %v997, %v1123
    %v1125 = vpop.f32.mrb[0].mxu0
    %1126 = vmatprep.mubr.f32.mxu0 0.0
    %1127 = vmatmul.mubr.f32.gmra.mrb[0].mxu0 %v124
    %v1128 = vpop.f32.mrb[0].mxu0
    %v1129 = vadd.f32 %v998, %v1128
    %v1130 = vpop.f32.mrb[0].mxu0
    %1131 = vmatprep.mubr.f32.mxu0 0.0
    %1132 = vmatmul.mubr.f32.gmra.mrb[0].mxu0 %v125
    %v1133 = vpop.f32.mrb[0].mxu0
    %v1134 = vadd.f32 %v999, %v1133
    %v1135 = vpop.f32.mrb[0].mxu0
    %1136 = vmatprep.mubr.f32.mxu0 0.0
    %1137 = vmatmul.mubr.f32.gmra.mrb[0].mxu0 %v126
    %v1138 = vpop.f32.mrb[0].mxu0
    %v1139 = vadd.f32 %v1000, %v1138
    %v1140 = vpop.f32.mrb[0].mxu0
    %1141 = vmatprep.mubr.f32.mxu0 0.0
    %1142 = vmatmul.mubr.f32.gmra.mrb[0].mxu0 %v127
    %v1143 = vpop.f32.mrb[0].mxu0
    %v1144 = vadd.f32 %v1001, %v1143
    %v1145 = vpop.f32.mrb[0].mxu0
    %1146 = vdwg.mxu0
    %s1147 = scalar_lea.vmem [#allocation9], 128
    %v1148 = vld [vmem:[%s1147] sm:$0xff]
    %v1149 = vld [vmem:[%s1147 + $0x8] sm:$0xff]
    %v1150 = vld [vmem:[%s1147 + $0x10] sm:$0xff]
    %v1151 = vld [vmem:[%s1147 + $0x18] sm:$0xff]
    %v1152 = vld [vmem:[%s1147 + $0x20] sm:$0xff]
    %v1153 = vld [vmem:[%s1147 + $0x28] sm:$0xff]
    %v1154 = vld [vmem:[%s1147 + $0x30] sm:$0xff]
    %v1155 = vld [vmem:[%s1147 + $0x38] sm:$0xff]
    %v1156 = vld [vmem:[%s1147 + $0x40] sm:$0xff]
    %v1157 = vld [vmem:[%s1147 + $0x48] sm:$0xff]
    %v1158 = vld [vmem:[%s1147 + $0x50] sm:$0xff]
    %v1159 = vld [vmem:[%s1147 + $0x58] sm:$0xff]
    %v1160 = vld [vmem:[%s1147 + $0x60] sm:$0xff]
    %v1161 = vld [vmem:[%s1147 + $0x68] sm:$0xff]
    %v1162 = vld [vmem:[%s1147 + $0x70] sm:$0xff]
    %v1163 = vld [vmem:[%s1147 + $0x78] sm:$0xff]
    %s1164 = scalar_lea.vmem %s4, 1
    %v1165 = vld [vmem:[%s1164] sm:$0x1]
    %v1167 = vlaneseq
    %v1168 = vshrl.u32 %v1167, 7
    %v1169 = vsub.s32 0, %v1168
    %v1170 = vrot.slane %v1165, %v1169
    %1172 = vmatprep.subr.mxu0 0.0
    %1173 = vmatpush1.msra.mxu0 %v1148
    %1174 = vmatprep.subr.mxu0 0.0
    %1175 = vmatpush1.msra.mxu0 %v1149
    %1176 = vmatprep.subr.mxu0 0.0
    %1177 = vmatpush1.msra.mxu0 %v1150
    %1178 = vmatprep.subr.mxu0 0.0
    %1179 = vmatpush1.msra.mxu0 %v1151
    %1180 = vmatprep.subr.mxu0 0.0
    %1181 = vmatpush1.msra.mxu0 %v1152
    %1182 = vmatprep.subr.mxu0 0.0
    %1183 = vmatpush1.msra.mxu0 %v1153
    %1184 = vmatprep.subr.mxu0 0.0
    %1185 = vmatpush1.msra.mxu0 %v1154
    %1186 = vmatprep.subr.mxu0 0.0
    %1187 = vmatpush1.msra.mxu0 %v1155
    %1188 = vmatprep.subr.mxu0 0.0
    %1189 = vmatpush1.msra.mxu0 %v1156
    %1190 = vmatprep.subr.mxu0 0.0
    %1191 = vmatpush1.msra.mxu0 %v1157
    %1192 = vmatprep.subr.mxu0 0.0
    %1193 = vmatpush1.msra.mxu0 %v1158
    %1194 = vmatprep.subr.mxu0 0.0
    %1195 = vmatpush1.msra.mxu0 %v1159
    %1196 = vmatprep.subr.mxu0 0.0
    %1197 = vmatpush1.msra.mxu0 %v1160
    %1198 = vmatprep.subr.mxu0 0.0
    %1199 = vmatpush1.msra.mxu0 %v1161
    %1200 = vmatprep.subr.mxu0 0.0
    %1201 = vmatpush1.msra.mxu0 %v1162
    %1202 = vmatprep.subr.mxu0 0.0
    %1203 = vmatpush1.msra.mxu0 %v1163
    %1204 = vmatprep.subr.mxu0 0.0
    %1205 = vmatpush1.msra.mxu0 0.0
    %1206 = vmatprep.subr.mxu0 0.0
    %1207 = vmatpush1.msra.mxu0 0.0
    %1208 = vmatprep.subr.mxu0 0.0
    %1209 = vmatpush1.msra.mxu0 0.0
    %1210 = vmatprep.subr.mxu0 0.0
    %1211 = vmatpush1.msra.mxu0 0.0
    %1212 = vmatprep.subr.mxu0 0.0
    %1213 = vmatpush1.msra.mxu0 0.0
    %1214 = vmatprep.subr.mxu0 0.0
    %1215 = vmatpush1.msra.mxu0 0.0
    %1216 = vmatprep.subr.mxu0 0.0
    %1217 = vmatpush1.msra.mxu0 0.0
    %1218 = vmatprep.subr.mxu0 0.0
    %1219 = vmatpush1.msra.mxu0 0.0
    %1220 = vmatprep.subr.mxu0 0.0
    %1221 = vmatpush1.msra.mxu0 0.0
    %1222 = vmatprep.subr.mxu0 0.0
    %1223 = vmatpush1.msra.mxu0 0.0
    %1224 = vmatprep.subr.mxu0 0.0
    %1225 = vmatpush1.msra.mxu0 0.0
    %1226 = vmatprep.subr.mxu0 0.0
    %1227 = vmatpush1.msra.mxu0 0.0
    %1228 = vmatprep.subr.mxu0 0.0
    %1229 = vmatpush1.msra.mxu0 0.0
    %1230 = vmatprep.subr.mxu0 0.0
    %1231 = vmatpush1.msra.mxu0 0.0
    %1232 = vmatprep.subr.mxu0 0.0
    %1233 = vmatpush1.msra.mxu0 0.0
    %1234 = vmatprep.subr.mxu0 0.0
    %1235 = vmatpush1.msra.mxu0 0.0
    %1236 = vmatprep.mubr.f32.mxu0 0.0
    %1237 = vmatmul.mubr.f32.gmra.mrb[0].mxu0 %v1069
    %v1238 = vpop.f32.mrb[0].mxu0
    %v1239 = vadd.f32 %v1170, %v1238
    %v1240 = vpop.f32.mrb[0].mxu0
    %1241 = vmatprep.mubr.f32.mxu0 0.0
    %1242 = vmatmul.mubr.f32.gmra.mrb[0].mxu0 %v1074
    %v1243 = vpop.f32.mrb[0].mxu0
    %v1244 = vadd.f32 %v1170, %v1243
    %v1245 = vpop.f32.mrb[0].mxu0
    %1246 = vmatprep.mubr.f32.mxu0 0.0
    %1247 = vmatmul.mubr.f32.gmra.mrb[0].mxu0 %v1079
    %v1248 = vpop.f32.mrb[0].mxu0
    %v1249 = vadd.f32 %v1170, %v1248
    %v1250 = vpop.f32.mrb[0].mxu0
    %1251 = vmatprep.mubr.f32.mxu0 0.0
    %1252 = vmatmul.mubr.f32.gmra.mrb[0].mxu0 %v1084
    %v1253 = vpop.f32.mrb[0].mxu0
    %v1254 = vadd.f32 %v1170, %v1253
    %v1255 = vpop.f32.mrb[0].mxu0
    %1256 = vmatprep.mubr.f32.mxu0 0.0
    %1257 = vmatmul.mubr.f32.gmra.mrb[0].mxu0 %v1089
    %v1258 = vpop.f32.mrb[0].mxu0
    %v1259 = vadd.f32 %v1170, %v1258
    %v1260 = vpop.f32.mrb[0].mxu0
    %1261 = vmatprep.mubr.f32.mxu0 0.0
    %1262 = vmatmul.mubr.f32.gmra.mrb[0].mxu0 %v1094
    %v1263 = vpop.f32.mrb[0].mxu0
    %v1264 = vadd.f32 %v1170, %v1263
    %v1265 = vpop.f32.mrb[0].mxu0
    %1266 = vmatprep.mubr.f32.mxu0 0.0
    %1267 = vmatmul.mubr.f32.gmra.mrb[0].mxu0 %v1099
    %v1268 = vpop.f32.mrb[0].mxu0
    %v1269 = vadd.f32 %v1170, %v1268
    %v1270 = vpop.f32.mrb[0].mxu0
    %1271 = vmatprep.mubr.f32.mxu0 0.0
    %1272 = vmatmul.mubr.f32.gmra.mrb[0].mxu0 %v1104
    %v1273 = vpop.f32.mrb[0].mxu0
    %v1274 = vadd.f32 %v1170, %v1273
    %v1275 = vpop.f32.mrb[0].mxu0
    %1276 = vmatprep.mubr.f32.mxu0 0.0
    %1277 = vmatmul.mubr.f32.gmra.mrb[0].mxu0 %v1109
    %v1278 = vpop.f32.mrb[0].mxu0
    %v1279 = vadd.f32 %v1170, %v1278
    %v1280 = vpop.f32.mrb[0].mxu0
    %1281 = vmatprep.mubr.f32.mxu0 0.0
    %1282 = vmatmul.mubr.f32.gmra.mrb[0].mxu0 %v1114
    %v1283 = vpop.f32.mrb[0].mxu0
    %v1284 = vadd.f32 %v1170, %v1283
    %v1285 = vpop.f32.mrb[0].mxu0
    %1286 = vmatprep.mubr.f32.mxu0 0.0
    %1287 = vmatmul.mubr.f32.gmra.mrb[0].mxu0 %v1119
    %v1288 = vpop.f32.mrb[0].mxu0
    %v1289 = vadd.f32 %v1170, %v1288
    %v1290 = vpop.f32.mrb[0].mxu0
    %1291 = vmatprep.mubr.f32.mxu0 0.0
    %1292 = vmatmul.mubr.f32.gmra.mrb[0].mxu0 %v1124
    %v1293 = vpop.f32.mrb[0].mxu0
    %v1294 = vadd.f32 %v1170, %v1293
    %v1295 = vpop.f32.mrb[0].mxu0
    %1296 = vmatprep.mubr.f32.mxu0 0.0
    %1297 = vmatmul.mubr.f32.gmra.mrb[0].mxu0 %v1129
    %v1298 = vpop.f32.mrb[0].mxu0
    %v1299 = vadd.f32 %v1170, %v1298
    %v1300 = vpop.f32.mrb[0].mxu0
    %1301 = vmatprep.mubr.f32.mxu0 0.0
    %1302 = vmatmul.mubr.f32.gmra.mrb[0].mxu0 %v1134
    %v1303 = vpop.f32.mrb[0].mxu0
    %v1304 = vadd.f32 %v1170, %v1303
    %v1305 = vpop.f32.mrb[0].mxu0
    %1306 = vmatprep.mubr.f32.mxu0 0.0
    %1307 = vmatmul.mubr.f32.gmra.mrb[0].mxu0 %v1139
    %v1308 = vpop.f32.mrb[0].mxu0
    %v1309 = vadd.f32 %v1170, %v1308
    %v1310 = vpop.f32.mrb[0].mxu0
    %1311 = vmatprep.mubr.f32.mxu0 0.0
    %1312 = vmatmul.mubr.f32.gmra.mrb[0].mxu0 %v1144
    %v1313 = vpop.f32.mrb[0].mxu0
    %v1314 = vadd.f32 %v1170, %v1313
    %v1315 = vpop.f32.mrb[0].mxu0
    %1316 = vdwg.mxu0
    %v1317 = vmax.f32 %v1239, 0.0
    %v1318 = vmax.f32 %v1244, 0.0
    %v1319 = vmax.f32 %v1249, 0.0
    %v1320 = vmax.f32 %v1254, 0.0
    %v1321 = vmax.f32 %v1259, 0.0
    %v1322 = vmax.f32 %v1264, 0.0
    %v1323 = vmax.f32 %v1269, 0.0
    %v1324 = vmax.f32 %v1274, 0.0
    %v1325 = vmax.f32 %v1279, 0.0
    %v1326 = vmax.f32 %v1284, 0.0
    %v1327 = vmax.f32 %v1289, 0.0
    %v1328 = vmax.f32 %v1294, 0.0
    %v1329 = vmax.f32 %v1299, 0.0
    %v1330 = vmax.f32 %v1304, 0.0
    %v1331 = vmax.f32 %v1309, 0.0
    %v1332 = vmax.f32 %v1314, 0.0
    %s1333 = scalar_lea.vmem [#allocation10], 128
    %v1334 = vld [vmem:[%s1333] sm:$0xff]
    %v1335 = vld [vmem:[%s1333 + $0x8] sm:$0xff]
    %v1336 = vld [vmem:[%s1333 + $0x10] sm:$0xff]
    %v1337 = vld [vmem:[%s1333 + $0x18] sm:$0xff]
    %v1338 = vld [vmem:[%s1333 + $0x20] sm:$0xff]
    %v1339 = vld [vmem:[%s1333 + $0x28] sm:$0xff]
    %v1340 = vld [vmem:[%s1333 + $0x30] sm:$0xff]
    %v1341 = vld [vmem:[%s1333 + $0x38] sm:$0xff]
    %v1342 = vld [vmem:[%s1333 + $0x40] sm:$0xff]
    %v1343 = vld [vmem:[%s1333 + $0x48] sm:$0xff]
    %v1344 = vld [vmem:[%s1333 + $0x50] sm:$0xff]
    %v1345 = vld [vmem:[%s1333 + $0x58] sm:$0xff]
    %v1346 = vld [vmem:[%s1333 + $0x60] sm:$0xff]
    %v1347 = vld [vmem:[%s1333 + $0x68] sm:$0xff]
    %v1348 = vld [vmem:[%s1333 + $0x70] sm:$0xff]
    %v1349 = vld [vmem:[%s1333 + $0x78] sm:$0xff]
    %s1350 = scalar_lea.vmem %s6, 1
    %v1351 = vld [vmem:[%s1350] sm:$0x1]
    %v1353 = vlaneseq
    %v1354 = vshrl.u32 %v1353, 7
    %v1355 = vsub.s32 0, %v1354
    %v1356 = vrot.slane %v1351, %v1355
    %1358 = vmatprep.subr.mxu0 0.0
    %1359 = vmatpush1.msra.mxu0 %v1334
    %1360 = vmatprep.subr.mxu0 0.0
    %1361 = vmatpush1.msra.mxu0 %v1335
    %1362 = vmatprep.subr.mxu0 0.0
    %1363 = vmatpush1.msra.mxu0 %v1336
    %1364 = vmatprep.subr.mxu0 0.0
    %1365 = vmatpush1.msra.mxu0 %v1337
    %1366 = vmatprep.subr.mxu0 0.0
    %1367 = vmatpush1.msra.mxu0 %v1338
    %1368 = vmatprep.subr.mxu0 0.0
    %1369 = vmatpush1.msra.mxu0 %v1339
    %1370 = vmatprep.subr.mxu0 0.0
    %1371 = vmatpush1.msra.mxu0 %v1340
    %1372 = vmatprep.subr.mxu0 0.0
    %1373 = vmatpush1.msra.mxu0 %v1341
    %1374 = vmatprep.subr.mxu0 0.0
    %1375 = vmatpush1.msra.mxu0 %v1342
    %1376 = vmatprep.subr.mxu0 0.0
    %1377 = vmatpush1.msra.mxu0 %v1343
    %1378 = vmatprep.subr.mxu0 0.0
    %1379 = vmatpush1.msra.mxu0 %v1344
    %1380 = vmatprep.subr.mxu0 0.0
    %1381 = vmatpush1.msra.mxu0 %v1345
    %1382 = vmatprep.subr.mxu0 0.0
    %1383 = vmatpush1.msra.mxu0 %v1346
    %1384 = vmatprep.subr.mxu0 0.0
    %1385 = vmatpush1.msra.mxu0 %v1347
    %1386 = vmatprep.subr.mxu0 0.0
    %1387 = vmatpush1.msra.mxu0 %v1348
    %1388 = vmatprep.subr.mxu0 0.0
    %1389 = vmatpush1.msra.mxu0 %v1349
    %1390 = vmatprep.subr.mxu0 0.0
    %1391 = vmatpush1.msra.mxu0 0.0
    %1392 = vmatprep.subr.mxu0 0.0
    %1393 = vmatpush1.msra.mxu0 0.0
    %1394 = vmatprep.subr.mxu0 0.0
    %1395 = vmatpush1.msra.mxu0 0.0
    %1396 = vmatprep.subr.mxu0 0.0
    %1397 = vmatpush1.msra.mxu0 0.0
    %1398 = vmatprep.subr.mxu0 0.0
    %1399 = vmatpush1.msra.mxu0 0.0
    %1400 = vmatprep.subr.mxu0 0.0
    %1401 = vmatpush1.msra.mxu0 0.0
    %1402 = vmatprep.subr.mxu0 0.0
    %1403 = vmatpush1.msra.mxu0 0.0
    %1404 = vmatprep.subr.mxu0 0.0
    %1405 = vmatpush1.msra.mxu0 0.0
    %1406 = vmatprep.subr.mxu0 0.0
    %1407 = vmatpush1.msra.mxu0 0.0
    %1408 = vmatprep.subr.mxu0 0.0
    %1409 = vmatpush1.msra.mxu0 0.0
    %1410 = vmatprep.subr.mxu0 0.0
    %1411 = vmatpush1.msra.mxu0 0.0
    %1412 = vmatprep.subr.mxu0 0.0
    %1413 = vmatpush1.msra.mxu0 0.0
    %1414 = vmatprep.subr.mxu0 0.0
    %1415 = vmatpush1.msra.mxu0 0.0
    %1416 = vmatprep.subr.mxu0 0.0
    %1417 = vmatpush1.msra.mxu0 0.0
    %1418 = vmatprep.subr.mxu0 0.0
    %1419 = vmatpush1.msra.mxu0 0.0
    %1420 = vmatprep.subr.mxu0 0.0
    %1421 = vmatpush1.msra.mxu0 0.0
    %1422 = vmatprep.mubr.f32.mxu0 0.0
    %1423 = vmatmul.mubr.f32.gmra.mrb[0].mxu0 %v1317
    %v1424 = vpop.f32.mrb[0].mxu0
    %v1425 = vadd.f32 %v1356, %v1424
    %v1426 = vpop.f32.mrb[0].mxu0
    %1427 = vmatprep.mubr.f32.mxu0 0.0
    %1428 = vmatmul.mubr.f32.gmra.mrb[0].mxu0 %v1318
    %v1429 = vpop.f32.mrb[0].mxu0
    %v1430 = vadd.f32 %v1356, %v1429
    %v1431 = vpop.f32.mrb[0].mxu0
    %1432 = vmatprep.mubr.f32.mxu0 0.0
    %1433 = vmatmul.mubr.f32.gmra.mrb[0].mxu0 %v1319
    %v1434 = vpop.f32.mrb[0].mxu0
    %v1435 = vadd.f32 %v1356, %v1434
    %v1436 = vpop.f32.mrb[0].mxu0
    %1437 = vmatprep.mubr.f32.mxu0 0.0
    %1438 = vmatmul.mubr.f32.gmra.mrb[0].mxu0 %v1320
    %v1439 = vpop.f32.mrb[0].mxu0
    %v1440 = vadd.f32 %v1356, %v1439
    %v1441 = vpop.f32.mrb[0].mxu0
    %1442 = vmatprep.mubr.f32.mxu0 0.0
    %1443 = vmatmul.mubr.f32.gmra.mrb[0].mxu0 %v1321
    %v1444 = vpop.f32.mrb[0].mxu0
    %v1445 = vadd.f32 %v1356, %v1444
    %v1446 = vpop.f32.mrb[0].mxu0
    %1447 = vmatprep.mubr.f32.mxu0 0.0
    %1448 = vmatmul.mubr.f32.gmra.mrb[0].mxu0 %v1322
    %v1449 = vpop.f32.mrb[0].mxu0
    %v1450 = vadd.f32 %v1356, %v1449
    %v1451 = vpop.f32.mrb[0].mxu0
    %1452 = vmatprep.mubr.f32.mxu0 0.0
    %1453 = vmatmul.mubr.f32.gmra.mrb[0].mxu0 %v1323
    %v1454 = vpop.f32.mrb[0].mxu0
    %v1455 = vadd.f32 %v1356, %v1454
    %v1456 = vpop.f32.mrb[0].mxu0
    %1457 = vmatprep.mubr.f32.mxu0 0.0
    %1458 = vmatmul.mubr.f32.gmra.mrb[0].mxu0 %v1324
    %v1459 = vpop.f32.mrb[0].mxu0
    %v1460 = vadd.f32 %v1356, %v1459
    %v1461 = vpop.f32.mrb[0].mxu0
    %1462 = vmatprep.mubr.f32.mxu0 0.0
    %1463 = vmatmul.mubr.f32.gmra.mrb[0].mxu0 %v1325
    %v1464 = vpop.f32.mrb[0].mxu0
    %v1465 = vadd.f32 %v1356, %v1464
    %v1466 = vpop.f32.mrb[0].mxu0
    %1467 = vmatprep.mubr.f32.mxu0 0.0
    %1468 = vmatmul.mubr.f32.gmra.mrb[0].mxu0 %v1326
    %v1469 = vpop.f32.mrb[0].mxu0
    %v1470 = vadd.f32 %v1356, %v1469
    %v1471 = vpop.f32.mrb[0].mxu0
    %1472 = vmatprep.mubr.f32.mxu0 0.0
    %1473 = vmatmul.mubr.f32.gmra.mrb[0].mxu0 %v1327
    %v1474 = vpop.f32.mrb[0].mxu0
    %v1475 = vadd.f32 %v1356, %v1474
    %v1476 = vpop.f32.mrb[0].mxu0
    %1477 = vmatprep.mubr.f32.mxu0 0.0
    %1478 = vmatmul.mubr.f32.gmra.mrb[0].mxu0 %v1328
    %v1479 = vpop.f32.mrb[0].mxu0
    %v1480 = vadd.f32 %v1356, %v1479
    %v1481 = vpop.f32.mrb[0].mxu0
    %1482 = vmatprep.mubr.f32.mxu0 0.0
    %1483 = vmatmul.mubr.f32.gmra.mrb[0].mxu0 %v1329
    %v1484 = vpop.f32.mrb[0].mxu0
    %v1485 = vadd.f32 %v1356, %v1484
    %v1486 = vpop.f32.mrb[0].mxu0
    %1487 = vmatprep.mubr.f32.mxu0 0.0
    %1488 = vmatmul.mubr.f32.gmra.mrb[0].mxu0 %v1330
    %v1489 = vpop.f32.mrb[0].mxu0
    %v1490 = vadd.f32 %v1356, %v1489
    %v1491 = vpop.f32.mrb[0].mxu0
    %1492 = vmatprep.mubr.f32.mxu0 0.0
    %1493 = vmatmul.mubr.f32.gmra.mrb[0].mxu0 %v1331
    %v1494 = vpop.f32.mrb[0].mxu0
    %v1495 = vadd.f32 %v1356, %v1494
    %v1496 = vpop.f32.mrb[0].mxu0
    %1497 = vmatprep.mubr.f32.mxu0 0.0
    %1498 = vmatmul.mubr.f32.gmra.mrb[0].mxu0 %v1332
    %v1499 = vpop.f32.mrb[0].mxu0
    %v1500 = vadd.f32 %v1356, %v1499
    %v1501 = vpop.f32.mrb[0].mxu0
    %1502 = vdwg.mxu0
    %s1503 = scalar_lea.vmem [#allocation12], 256
    %v1504 = vld [vmem:[%s1503] sm:$0xff]
    %v1505 = vld [vmem:[%s1503 + $0x8] sm:$0xff]
    %v1506 = vld [vmem:[%s1503 + $0x10] sm:$0xff]
    %v1507 = vld [vmem:[%s1503 + $0x18] sm:$0xff]
    %v1508 = vld [vmem:[%s1503 + $0x20] sm:$0xff]
    %v1509 = vld [vmem:[%s1503 + $0x28] sm:$0xff]
    %v1510 = vld [vmem:[%s1503 + $0x30] sm:$0xff]
    %v1511 = vld [vmem:[%s1503 + $0x38] sm:$0xff]
    %v1512 = vld [vmem:[%s1503 + $0x40] sm:$0xff]
    %v1513 = vld [vmem:[%s1503 + $0x48] sm:$0xff]
    %v1514 = vld [vmem:[%s1503 + $0x50] sm:$0xff]
    %v1515 = vld [vmem:[%s1503 + $0x58] sm:$0xff]
    %v1516 = vld [vmem:[%s1503 + $0x60] sm:$0xff]
    %v1517 = vld [vmem:[%s1503 + $0x68] sm:$0xff]
    %v1518 = vld [vmem:[%s1503 + $0x70] sm:$0xff]
    %v1519 = vld [vmem:[%s1503 + $0x78] sm:$0xff]
    %1520 = vmatprep.subr.mxu0 0.0
    %1521 = vmatpush1.msra.mxu0 %v1504
    %1522 = vmatprep.subr.mxu0 0.0
    %1523 = vmatpush1.msra.mxu0 %v1505
    %1524 = vmatprep.subr.mxu0 0.0
    %1525 = vmatpush1.msra.mxu0 %v1506
    %1526 = vmatprep.subr.mxu0 0.0
    %1527 = vmatpush1.msra.mxu0 %v1507
    %1528 = vmatprep.subr.mxu0 0.0
    %1529 = vmatpush1.msra.mxu0 %v1508
    %1530 = vmatprep.subr.mxu0 0.0
    %1531 = vmatpush1.msra.mxu0 %v1509
    %1532 = vmatprep.subr.mxu0 0.0
    %1533 = vmatpush1.msra.mxu0 %v1510
    %1534 = vmatprep.subr.mxu0 0.0
    %1535 = vmatpush1.msra.mxu0 %v1511
    %1536 = vmatprep.subr.mxu0 0.0
    %1537 = vmatpush1.msra.mxu0 %v1512
    %1538 = vmatprep.subr.mxu0 0.0
    %1539 = vmatpush1.msra.mxu0 %v1513
    %1540 = vmatprep.subr.mxu0 0.0
    %1541 = vmatpush1.msra.mxu0 %v1514
    %1542 = vmatprep.subr.mxu0 0.0
    %1543 = vmatpush1.msra.mxu0 %v1515
    %1544 = vmatprep.subr.mxu0 0.0
    %1545 = vmatpush1.msra.mxu0 %v1516
    %1546 = vmatprep.subr.mxu0 0.0
    %1547 = vmatpush1.msra.mxu0 %v1517
    %1548 = vmatprep.subr.mxu0 0.0
    %1549 = vmatpush1.msra.mxu0 %v1518
    %1550 = vmatprep.subr.mxu0 0.0
    %1551 = vmatpush1.msra.mxu0 %v1519
    %1552 = vmatprep.subr.mxu0 0.0
    %1553 = vmatpush1.msra.mxu0 0.0
    %1554 = vmatprep.subr.mxu0 0.0
    %1555 = vmatpush1.msra.mxu0 0.0
    %1556 = vmatprep.subr.mxu0 0.0
    %1557 = vmatpush1.msra.mxu0 0.0
    %1558 = vmatprep.subr.mxu0 0.0
    %1559 = vmatpush1.msra.mxu0 0.0
    %1560 = vmatprep.subr.mxu0 0.0
    %1561 = vmatpush1.msra.mxu0 0.0
    %1562 = vmatprep.subr.mxu0 0.0
    %1563 = vmatpush1.msra.mxu0 0.0
    %1564 = vmatprep.subr.mxu0 0.0
    %1565 = vmatpush1.msra.mxu0 0.0
    %1566 = vmatprep.subr.mxu0 0.0
    %1567 = vmatpush1.msra.mxu0 0.0
    %1568 = vmatprep.subr.mxu0 0.0
    %1569 = vmatpush1.msra.mxu0 0.0
    %1570 = vmatprep.subr.mxu0 0.0
    %1571 = vmatpush1.msra.mxu0 0.0
    %1572 = vmatprep.subr.mxu0 0.0
    %1573 = vmatpush1.msra.mxu0 0.0
    %1574 = vmatprep.subr.mxu0 0.0
    %1575 = vmatpush1.msra.mxu0 0.0
    %1576 = vmatprep.subr.mxu0 0.0
    %1577 = vmatpush1.msra.mxu0 0.0
    %1578 = vmatprep.subr.mxu0 0.0
    %1579 = vmatpush1.msra.mxu0 0.0
    %1580 = vmatprep.subr.mxu0 0.0
    %1581 = vmatpush1.msra.mxu0 0.0
    %1582 = vmatprep.subr.mxu0 0.0
    %1583 = vmatpush1.msra.mxu0 0.0
    %1584 = vmatprep.mubr.f32.mxu0 0.0
    %1585 = vmatmul.mubr.f32.gmra.mrb[0].mxu0 %v1425
    %v1586 = vpop.f32.mrb[0].mxu0
    %v1587 = vadd.f32 0.0, %v1586
    %v1588 = vpop.f32.mrb[0].mxu0
    %1589 = vmatprep.mubr.f32.mxu0 0.0
    %1590 = vmatmul.mubr.f32.gmra.mrb[0].mxu0 %v1430
    %v1591 = vpop.f32.mrb[0].mxu0
    %v1592 = vadd.f32 0.0, %v1591
    %v1593 = vpop.f32.mrb[0].mxu0
    %1594 = vmatprep.mubr.f32.mxu0 0.0
    %1595 = vmatmul.mubr.f32.gmra.mrb[0].mxu0 %v1435
    %v1596 = vpop.f32.mrb[0].mxu0
    %v1597 = vadd.f32 0.0, %v1596
    %v1598 = vpop.f32.mrb[0].mxu0
    %1599 = vmatprep.mubr.f32.mxu0 0.0
    %1600 = vmatmul.mubr.f32.gmra.mrb[0].mxu0 %v1440
    %v1601 = vpop.f32.mrb[0].mxu0
    %v1602 = vadd.f32 0.0, %v1601
    %v1603 = vpop.f32.mrb[0].mxu0
    %1604 = vmatprep.mubr.f32.mxu0 0.0
    %1605 = vmatmul.mubr.f32.gmra.mrb[0].mxu0 %v1445
    %v1606 = vpop.f32.mrb[0].mxu0
    %v1607 = vadd.f32 0.0, %v1606
    %v1608 = vpop.f32.mrb[0].mxu0
    %1609 = vmatprep.mubr.f32.mxu0 0.0
    %1610 = vmatmul.mubr.f32.gmra.mrb[0].mxu0 %v1450
    %v1611 = vpop.f32.mrb[0].mxu0
    %v1612 = vadd.f32 0.0, %v1611
    %v1613 = vpop.f32.mrb[0].mxu0
    %1614 = vmatprep.mubr.f32.mxu0 0.0
    %1615 = vmatmul.mubr.f32.gmra.mrb[0].mxu0 %v1455
    %v1616 = vpop.f32.mrb[0].mxu0
    %v1617 = vadd.f32 0.0, %v1616
    %v1618 = vpop.f32.mrb[0].mxu0
    %1619 = vmatprep.mubr.f32.mxu0 0.0
    %1620 = vmatmul.mubr.f32.gmra.mrb[0].mxu0 %v1460
    %v1621 = vpop.f32.mrb[0].mxu0
    %v1622 = vadd.f32 0.0, %v1621
    %v1623 = vpop.f32.mrb[0].mxu0
    %1624 = vmatprep.mubr.f32.mxu0 0.0
    %1625 = vmatmul.mubr.f32.gmra.mrb[0].mxu0 %v1465
    %v1626 = vpop.f32.mrb[0].mxu0
    %v1627 = vadd.f32 0.0, %v1626
    %v1628 = vpop.f32.mrb[0].mxu0
    %1629 = vmatprep.mubr.f32.mxu0 0.0
    %1630 = vmatmul.mubr.f32.gmra.mrb[0].mxu0 %v1470
    %v1631 = vpop.f32.mrb[0].mxu0
    %v1632 = vadd.f32 0.0, %v1631
    %v1633 = vpop.f32.mrb[0].mxu0
    %1634 = vmatprep.mubr.f32.mxu0 0.0
    %1635 = vmatmul.mubr.f32.gmra.mrb[0].mxu0 %v1475
    %v1636 = vpop.f32.mrb[0].mxu0
    %v1637 = vadd.f32 0.0, %v1636
    %v1638 = vpop.f32.mrb[0].mxu0
    %1639 = vmatprep.mubr.f32.mxu0 0.0
    %1640 = vmatmul.mubr.f32.gmra.mrb[0].mxu0 %v1480
    %v1641 = vpop.f32.mrb[0].mxu0
    %v1642 = vadd.f32 0.0, %v1641
    %v1643 = vpop.f32.mrb[0].mxu0
    %1644 = vmatprep.mubr.f32.mxu0 0.0
    %1645 = vmatmul.mubr.f32.gmra.mrb[0].mxu0 %v1485
    %v1646 = vpop.f32.mrb[0].mxu0
    %v1647 = vadd.f32 0.0, %v1646
    %v1648 = vpop.f32.mrb[0].mxu0
    %1649 = vmatprep.mubr.f32.mxu0 0.0
    %1650 = vmatmul.mubr.f32.gmra.mrb[0].mxu0 %v1490
    %v1651 = vpop.f32.mrb[0].mxu0
    %v1652 = vadd.f32 0.0, %v1651
    %v1653 = vpop.f32.mrb[0].mxu0
    %1654 = vmatprep.mubr.f32.mxu0 0.0
    %1655 = vmatmul.mubr.f32.gmra.mrb[0].mxu0 %v1495
    %v1656 = vpop.f32.mrb[0].mxu0
    %v1657 = vadd.f32 0.0, %v1656
    %v1658 = vpop.f32.mrb[0].mxu0
    %1659 = vmatprep.mubr.f32.mxu0 0.0
    %1660 = vmatmul.mubr.f32.gmra.mrb[0].mxu0 %v1500
    %v1661 = vpop.f32.mrb[0].mxu0
    %v1662 = vadd.f32 0.0, %v1661
    %v1663 = vpop.f32.mrb[0].mxu0
    %1664 = vdwg.mxu0
    %v1665 = vadd.f32 %v905, %v1587
    %v1666 = vadd.f32 %v910, %v1592
    %v1667 = vadd.f32 %v915, %v1597
    %v1668 = vadd.f32 %v920, %v1602
    %v1669 = vadd.f32 %v925, %v1607
    %v1670 = vadd.f32 %v930, %v1612
    %v1671 = vadd.f32 %v935, %v1617
    %v1672 = vadd.f32 %v940, %v1622
    %v1673 = vadd.f32 %v945, %v1627
    %v1674 = vadd.f32 %v950, %v1632
    %v1675 = vadd.f32 %v955, %v1637
    %v1676 = vadd.f32 %v960, %v1642
    %v1677 = vadd.f32 %v965, %v1647
    %v1678 = vadd.f32 %v970, %v1652
    %v1679 = vadd.f32 %v975, %v1657
    %v1680 = vadd.f32 %v980, %v1662
    %s1681 = sld [smem:[#allocation2 + $0x2]]
    %s1682 = sadd.f32 %s1681, 1.0
    %v1683 = vstv %s1682
    %v1684 = vmul.f32 %v1683, %v1425
    %v1685 = vmul.f32 %v1683, %v1430
    %v1686 = vmul.f32 %v1683, %v1435
    %v1687 = vmul.f32 %v1683, %v1440
    %v1688 = vmul.f32 %v1683, %v1445
    %v1689 = vmul.f32 %v1683, %v1450
    %v1690 = vmul.f32 %v1683, %v1455
    %v1691 = vmul.f32 %v1683, %v1460
    %v1692 = vmul.f32 %v1683, %v1465
    %v1693 = vmul.f32 %v1683, %v1470
    %v1694 = vmul.f32 %v1683, %v1475
    %v1695 = vmul.f32 %v1683, %v1480
    %v1696 = vmul.f32 %v1683, %v1485
    %v1697 = vmul.f32 %v1683, %v1490
    %v1698 = vmul.f32 %v1683, %v1495
    %v1699 = vmul.f32 %v1683, %v1500
    %1700 = vmatprep.subr.mxu0 0.0
    %1701 = vmatpush1.msra.mxu0 %v1425
    %1702 = vmatprep.subr.mxu0 0.0
    %1703 = vmatpush1.msra.mxu0 %v1430
    %1704 = vmatprep.subr.mxu0 0.0
    %1705 = vmatpush1.msra.mxu0 %v1435
    %1706 = vmatprep.subr.mxu0 0.0
    %1707 = vmatpush1.msra.mxu0 %v1440
    %1708 = vmatprep.subr.mxu0 0.0
    %1709 = vmatpush1.msra.mxu0 %v1445
    %1710 = vmatprep.subr.mxu0 0.0
    %1711 = vmatpush1.msra.mxu0 %v1450
    %1712 = vmatprep.subr.mxu0 0.0
    %1713 = vmatpush1.msra.mxu0 %v1455
    %1714 = vmatprep.subr.mxu0 0.0
    %1715 = vmatpush1.msra.mxu0 %v1460
    %1716 = vmatprep.subr.mxu0 0.0
    %1717 = vmatpush1.msra.mxu0 %v1465
    %1718 = vmatprep.subr.mxu0 0.0
    %1719 = vmatpush1.msra.mxu0 %v1470
    %1720 = vmatprep.subr.mxu0 0.0
    %1721 = vmatpush1.msra.mxu0 %v1475
    %1722 = vmatprep.subr.mxu0 0.0
    %1723 = vmatpush1.msra.mxu0 %v1480
    %1724 = vmatprep.subr.mxu0 0.0
    %1725 = vmatpush1.msra.mxu0 %v1485
    %1726 = vmatprep.subr.mxu0 0.0
    %1727 = vmatpush1.msra.mxu0 %v1490
    %1728 = vmatprep.subr.mxu0 0.0
    %1729 = vmatpush1.msra.mxu0 %v1495
    %1730 = vmatprep.subr.mxu0 0.0
    %1731 = vmatpush1.msra.mxu0 %v1500
    %1732 = vmatprep.subr.mxu0 0.0
    %1733 = vmatpush1.msra.mxu0 0.0
    %1734 = vmatprep.subr.mxu0 0.0
    %1735 = vmatpush1.msra.mxu0 0.0
    %1736 = vmatprep.subr.mxu0 0.0
    %1737 = vmatpush1.msra.mxu0 0.0
    %1738 = vmatprep.subr.mxu0 0.0
    %1739 = vmatpush1.msra.mxu0 0.0
    %1740 = vmatprep.subr.mxu0 0.0
    %1741 = vmatpush1.msra.mxu0 0.0
    %1742 = vmatprep.subr.mxu0 0.0
    %1743 = vmatpush1.msra.mxu0 0.0
    %1744 = vmatprep.subr.mxu0 0.0
    %1745 = vmatpush1.msra.mxu0 0.0
    %1746 = vmatprep.subr.mxu0 0.0
    %1747 = vmatpush1.msra.mxu0 0.0
    %1748 = vmatprep.subr.mxu0 0.0
    %1749 = vmatpush1.msra.mxu0 0.0
    %1750 = vmatprep.subr.mxu0 0.0
    %1751 = vmatpush1.msra.mxu0 0.0
    %1752 = vmatprep.subr.mxu0 0.0
    %1753 = vmatpush1.msra.mxu0 0.0
    %1754 = vmatprep.subr.mxu0 0.0
    %1755 = vmatpush1.msra.mxu0 0.0
    %1756 = vmatprep.subr.mxu0 0.0
    %1757 = vmatpush1.msra.mxu0 0.0
    %1758 = vmatprep.subr.mxu0 0.0
    %1759 = vmatpush1.msra.mxu0 0.0
    %1760 = vmatprep.subr.mxu0 0.0
    %1761 = vmatpush1.msra.mxu0 0.0
    %1762 = vmatprep.subr.mxu0 0.0
    %1763 = vmatpush1.msra.mxu0 0.0
    %1764 = vmatprep.mubr.f32.mxu0 0.0
    %1765 = vmatmul.mubr.f32.gmra.mrb[0].mxu0 %v112
    %v1766 = vpop.f32.mrb[0].mxu0
    %v1767 = vadd.f32 %v1684, %v1766
    %v1768 = vpop.f32.mrb[0].mxu0
    %1769 = vmatprep.mubr.f32.mxu0 0.0
    %1770 = vmatmul.mubr.f32.gmra.mrb[0].mxu0 %v113
    %v1771 = vpop.f32.mrb[0].mxu0
    %v1772 = vadd.f32 %v1685, %v1771
    %v1773 = vpop.f32.mrb[0].mxu0
    %1774 = vmatprep.mubr.f32.mxu0 0.0
    %1775 = vmatmul.mubr.f32.gmra.mrb[0].mxu0 %v114
    %v1776 = vpop.f32.mrb[0].mxu0
    %v1777 = vadd.f32 %v1686, %v1776
    %v1778 = vpop.f32.mrb[0].mxu0
    %1779 = vmatprep.mubr.f32.mxu0 0.0
    %1780 = vmatmul.mubr.f32.gmra.mrb[0].mxu0 %v115
    %v1781 = vpop.f32.mrb[0].mxu0
    %v1782 = vadd.f32 %v1687, %v1781
    %v1783 = vpop.f32.mrb[0].mxu0
    %1784 = vmatprep.mubr.f32.mxu0 0.0
    %1785 = vmatmul.mubr.f32.gmra.mrb[0].mxu0 %v116
    %v1786 = vpop.f32.mrb[0].mxu0
    %v1787 = vadd.f32 %v1688, %v1786
    %v1788 = vpop.f32.mrb[0].mxu0
    %1789 = vmatprep.mubr.f32.mxu0 0.0
    %1790 = vmatmul.mubr.f32.gmra.mrb[0].mxu0 %v117
    %v1791 = vpop.f32.mrb[0].mxu0
    %v1792 = vadd.f32 %v1689, %v1791
    %v1793 = vpop.f32.mrb[0].mxu0
    %1794 = vmatprep.mubr.f32.mxu0 0.0
    %1795 = vmatmul.mubr.f32.gmra.mrb[0].mxu0 %v118
    %v1796 = vpop.f32.mrb[0].mxu0
    %v1797 = vadd.f32 %v1690, %v1796
    %v1798 = vpop.f32.mrb[0].mxu0
    %1799 = vmatprep.mubr.f32.mxu0 0.0
    %1800 = vmatmul.mubr.f32.gmra.mrb[0].mxu0 %v119
    %v1801 = vpop.f32.mrb[0].mxu0
    %v1802 = vadd.f32 %v1691, %v1801
    %v1803 = vpop.f32.mrb[0].mxu0
    %1804 = vmatprep.mubr.f32.mxu0 0.0
    %1805 = vmatmul.mubr.f32.gmra.mrb[0].mxu0 %v120
    %v1806 = vpop.f32.mrb[0].mxu0
    %v1807 = vadd.f32 %v1692, %v1806
    %v1808 = vpop.f32.mrb[0].mxu0
    %1809 = vmatprep.mubr.f32.mxu0 0.0
    %1810 = vmatmul.mubr.f32.gmra.mrb[0].mxu0 %v121
    %v1811 = vpop.f32.mrb[0].mxu0
    %v1812 = vadd.f32 %v1693, %v1811
    %v1813 = vpop.f32.mrb[0].mxu0
    %1814 = vmatprep.mubr.f32.mxu0 0.0
    %1815 = vmatmul.mubr.f32.gmra.mrb[0].mxu0 %v122
    %v1816 = vpop.f32.mrb[0].mxu0
    %v1817 = vadd.f32 %v1694, %v1816
    %v1818 = vpop.f32.mrb[0].mxu0
    %1819 = vmatprep.mubr.f32.mxu0 0.0
    %1820 = vmatmul.mubr.f32.gmra.mrb[0].mxu0 %v123
    %v1821 = vpop.f32.mrb[0].mxu0
    %v1822 = vadd.f32 %v1695, %v1821
    %v1823 = vpop.f32.mrb[0].mxu0
    %1824 = vmatprep.mubr.f32.mxu0 0.0
    %1825 = vmatmul.mubr.f32.gmra.mrb[0].mxu0 %v124
    %v1826 = vpop.f32.mrb[0].mxu0
    %v1827 = vadd.f32 %v1696, %v1826
    %v1828 = vpop.f32.mrb[0].mxu0
    %1829 = vmatprep.mubr.f32.mxu0 0.0
    %1830 = vmatmul.mubr.f32.gmra.mrb[0].mxu0 %v125
    %v1831 = vpop.f32.mrb[0].mxu0
    %v1832 = vadd.f32 %v1697, %v1831
    %v1833 = vpop.f32.mrb[0].mxu0
    %1834 = vmatprep.mubr.f32.mxu0 0.0
    %1835 = vmatmul.mubr.f32.gmra.mrb[0].mxu0 %v126
    %v1836 = vpop.f32.mrb[0].mxu0
    %v1837 = vadd.f32 %v1698, %v1836
    %v1838 = vpop.f32.mrb[0].mxu0
    %1839 = vmatprep.mubr.f32.mxu0 0.0
    %1840 = vmatmul.mubr.f32.gmra.mrb[0].mxu0 %v127
    %v1841 = vpop.f32.mrb[0].mxu0
    %v1842 = vadd.f32 %v1699, %v1841
    %v1843 = vpop.f32.mrb[0].mxu0
    %1844 = vdwg.mxu0
    %s1845 = scalar_lea.vmem [#allocation9], 256
    %v1846 = vld [vmem:[%s1845] sm:$0xff]
    %v1847 = vld [vmem:[%s1845 + $0x8] sm:$0xff]
    %v1848 = vld [vmem:[%s1845 + $0x10] sm:$0xff]
    %v1849 = vld [vmem:[%s1845 + $0x18] sm:$0xff]
    %v1850 = vld [vmem:[%s1845 + $0x20] sm:$0xff]
    %v1851 = vld [vmem:[%s1845 + $0x28] sm:$0xff]
    %v1852 = vld [vmem:[%s1845 + $0x30] sm:$0xff]
    %v1853 = vld [vmem:[%s1845 + $0x38] sm:$0xff]
    %v1854 = vld [vmem:[%s1845 + $0x40] sm:$0xff]
    %v1855 = vld [vmem:[%s1845 + $0x48] sm:$0xff]
    %v1856 = vld [vmem:[%s1845 + $0x50] sm:$0xff]
    %v1857 = vld [vmem:[%s1845 + $0x58] sm:$0xff]
    %v1858 = vld [vmem:[%s1845 + $0x60] sm:$0xff]
    %v1859 = vld [vmem:[%s1845 + $0x68] sm:$0xff]
    %v1860 = vld [vmem:[%s1845 + $0x70] sm:$0xff]
    %v1861 = vld [vmem:[%s1845 + $0x78] sm:$0xff]
    %s1862 = scalar_lea.vmem %s4, 2
    %v1863 = vld [vmem:[%s1862] sm:$0x1]
    %v1865 = vlaneseq
    %v1866 = vshrl.u32 %v1865, 7
    %v1867 = vsub.s32 0, %v1866
    %v1868 = vrot.slane %v1863, %v1867
    %1870 = vmatprep.subr.mxu0 0.0
    %1871 = vmatpush1.msra.mxu0 %v1846
    %1872 = vmatprep.subr.mxu0 0.0
    %1873 = vmatpush1.msra.mxu0 %v1847
    %1874 = vmatprep.subr.mxu0 0.0
    %1875 = vmatpush1.msra.mxu0 %v1848
    %1876 = vmatprep.subr.mxu0 0.0
    %1877 = vmatpush1.msra.mxu0 %v1849
    %1878 = vmatprep.subr.mxu0 0.0
    %1879 = vmatpush1.msra.mxu0 %v1850
    %1880 = vmatprep.subr.mxu0 0.0
    %1881 = vmatpush1.msra.mxu0 %v1851
    %1882 = vmatprep.subr.mxu0 0.0
    %1883 = vmatpush1.msra.mxu0 %v1852
    %1884 = vmatprep.subr.mxu0 0.0
    %1885 = vmatpush1.msra.mxu0 %v1853
    %1886 = vmatprep.subr.mxu0 0.0
    %1887 = vmatpush1.msra.mxu0 %v1854
    %1888 = vmatprep.subr.mxu0 0.0
    %1889 = vmatpush1.msra.mxu0 %v1855
    %1890 = vmatprep.subr.mxu0 0.0
    %1891 = vmatpush1.msra.mxu0 %v1856
    %1892 = vmatprep.subr.mxu0 0.0
    %1893 = vmatpush1.msra.mxu0 %v1857
    %1894 = vmatprep.subr.mxu0 0.0
    %1895 = vmatpush1.msra.mxu0 %v1858
    %1896 = vmatprep.subr.mxu0 0.0
    %1897 = vmatpush1.msra.mxu0 %v1859
    %1898 = vmatprep.subr.mxu0 0.0
    %1899 = vmatpush1.msra.mxu0 %v1860
    %1900 = vmatprep.subr.mxu0 0.0
    %1901 = vmatpush1.msra.mxu0 %v1861
    %1902 = vmatprep.subr.mxu0 0.0
    %1903 = vmatpush1.msra.mxu0 0.0
    %1904 = vmatprep.subr.mxu0 0.0
    %1905 = vmatpush1.msra.mxu0 0.0
    %1906 = vmatprep.subr.mxu0 0.0
    %1907 = vmatpush1.msra.mxu0 0.0
    %1908 = vmatprep.subr.mxu0 0.0
    %1909 = vmatpush1.msra.mxu0 0.0
    %1910 = vmatprep.subr.mxu0 0.0
    %1911 = vmatpush1.msra.mxu0 0.0
    %1912 = vmatprep.subr.mxu0 0.0
    %1913 = vmatpush1.msra.mxu0 0.0
    %1914 = vmatprep.subr.mxu0 0.0
    %1915 = vmatpush1.msra.mxu0 0.0
    %1916 = vmatprep.subr.mxu0 0.0
    %1917 = vmatpush1.msra.mxu0 0.0
    %1918 = vmatprep.subr.mxu0 0.0
    %1919 = vmatpush1.msra.mxu0 0.0
    %1920 = vmatprep.subr.mxu0 0.0
    %1921 = vmatpush1.msra.mxu0 0.0
    %1922 = vmatprep.subr.mxu0 0.0
    %1923 = vmatpush1.msra.mxu0 0.0
    %1924 = vmatprep.subr.mxu0 0.0
    %1925 = vmatpush1.msra.mxu0 0.0
    %1926 = vmatprep.subr.mxu0 0.0
    %1927 = vmatpush1.msra.mxu0 0.0
    %1928 = vmatprep.subr.mxu0 0.0
    %1929 = vmatpush1.msra.mxu0 0.0
    %1930 = vmatprep.subr.mxu0 0.0
    %1931 = vmatpush1.msra.mxu0 0.0
    %1932 = vmatprep.subr.mxu0 0.0
    %1933 = vmatpush1.msra.mxu0 0.0
    %1934 = vmatprep.mubr.f32.mxu0 0.0
    %1935 = vmatmul.mubr.f32.gmra.mrb[0].mxu0 %v1767
    %v1936 = vpop.f32.mrb[0].mxu0
    %v1937 = vadd.f32 %v1868, %v1936
    %v1938 = vpop.f32.mrb[0].mxu0
    %1939 = vmatprep.mubr.f32.mxu0 0.0
    %1940 = vmatmul.mubr.f32.gmra.mrb[0].mxu0 %v1772
    %v1941 = vpop.f32.mrb[0].mxu0
    %v1942 = vadd.f32 %v1868, %v1941
    %v1943 = vpop.f32.mrb[0].mxu0
    %1944 = vmatprep.mubr.f32.mxu0 0.0
    %1945 = vmatmul.mubr.f32.gmra.mrb[0].mxu0 %v1777
    %v1946 = vpop.f32.mrb[0].mxu0
    %v1947 = vadd.f32 %v1868, %v1946
    %v1948 = vpop.f32.mrb[0].mxu0
    %1949 = vmatprep.mubr.f32.mxu0 0.0
    %1950 = vmatmul.mubr.f32.gmra.mrb[0].mxu0 %v1782
    %v1951 = vpop.f32.mrb[0].mxu0
    %v1952 = vadd.f32 %v1868, %v1951
    %v1953 = vpop.f32.mrb[0].mxu0
    %1954 = vmatprep.mubr.f32.mxu0 0.0
    %1955 = vmatmul.mubr.f32.gmra.mrb[0].mxu0 %v1787
    %v1956 = vpop.f32.mrb[0].mxu0
    %v1957 = vadd.f32 %v1868, %v1956
    %v1958 = vpop.f32.mrb[0].mxu0
    %1959 = vmatprep.mubr.f32.mxu0 0.0
    %1960 = vmatmul.mubr.f32.gmra.mrb[0].mxu0 %v1792
    %v1961 = vpop.f32.mrb[0].mxu0
    %v1962 = vadd.f32 %v1868, %v1961
    %v1963 = vpop.f32.mrb[0].mxu0
    %1964 = vmatprep.mubr.f32.mxu0 0.0
    %1965 = vmatmul.mubr.f32.gmra.mrb[0].mxu0 %v1797
    %v1966 = vpop.f32.mrb[0].mxu0
    %v1967 = vadd.f32 %v1868, %v1966
    %v1968 = vpop.f32.mrb[0].mxu0
    %1969 = vmatprep.mubr.f32.mxu0 0.0
    %1970 = vmatmul.mubr.f32.gmra.mrb[0].mxu0 %v1802
    %v1971 = vpop.f32.mrb[0].mxu0
    %v1972 = vadd.f32 %v1868, %v1971
    %v1973 = vpop.f32.mrb[0].mxu0
    %1974 = vmatprep.mubr.f32.mxu0 0.0
    %1975 = vmatmul.mubr.f32.gmra.mrb[0].mxu0 %v1807
    %v1976 = vpop.f32.mrb[0].mxu0
    %v1977 = vadd.f32 %v1868, %v1976
    %v1978 = vpop.f32.mrb[0].mxu0
    %1979 = vmatprep.mubr.f32.mxu0 0.0
    %1980 = vmatmul.mubr.f32.gmra.mrb[0].mxu0 %v1812
    %v1981 = vpop.f32.mrb[0].mxu0
    %v1982 = vadd.f32 %v1868, %v1981
    %v1983 = vpop.f32.mrb[0].mxu0
    %1984 = vmatprep.mubr.f32.mxu0 0.0
    %1985 = vmatmul.mubr.f32.gmra.mrb[0].mxu0 %v1817
    %v1986 = vpop.f32.mrb[0].mxu0
    %v1987 = vadd.f32 %v1868, %v1986
    %v1988 = vpop.f32.mrb[0].mxu0
    %1989 = vmatprep.mubr.f32.mxu0 0.0
    %1990 = vmatmul.mubr.f32.gmra.mrb[0].mxu0 %v1822
    %v1991 = vpop.f32.mrb[0].mxu0
    %v1992 = vadd.f32 %v1868, %v1991
    %v1993 = vpop.f32.mrb[0].mxu0
    %1994 = vmatprep.mubr.f32.mxu0 0.0
    %1995 = vmatmul.mubr.f32.gmra.mrb[0].mxu0 %v1827
    %v1996 = vpop.f32.mrb[0].mxu0
    %v1997 = vadd.f32 %v1868, %v1996
    %v1998 = vpop.f32.mrb[0].mxu0
    %1999 = vmatprep.mubr.f32.mxu0 0.0
    %2000 = vmatmul.mubr.f32.gmra.mrb[0].mxu0 %v1832
    %v2001 = vpop.f32.mrb[0].mxu0
    %v2002 = vadd.f32 %v1868, %v2001
    %v2003 = vpop.f32.mrb[0].mxu0
    %2004 = vmatprep.mubr.f32.mxu0 0.0
    %2005 = vmatmul.mubr.f32.gmra.mrb[0].mxu0 %v1837
    %v2006 = vpop.f32.mrb[0].mxu0
    %v2007 = vadd.f32 %v1868, %v2006
    %v2008 = vpop.f32.mrb[0].mxu0
    %2009 = vmatprep.mubr.f32.mxu0 0.0
    %2010 = vmatmul.mubr.f32.gmra.mrb[0].mxu0 %v1842
    %v2011 = vpop.f32.mrb[0].mxu0
    %v2012 = vadd.f32 %v1868, %v2011
    %v2013 = vpop.f32.mrb[0].mxu0
    %2014 = vdwg.mxu0
    %v2015 = vmax.f32 %v1937, 0.0
    %v2016 = vmax.f32 %v1942, 0.0
    %v2017 = vmax.f32 %v1947, 0.0
    %v2018 = vmax.f32 %v1952, 0.0
    %v2019 = vmax.f32 %v1957, 0.0
    %v2020 = vmax.f32 %v1962, 0.0
    %v2021 = vmax.f32 %v1967, 0.0
    %v2022 = vmax.f32 %v1972, 0.0
    %v2023 = vmax.f32 %v1977, 0.0
    %v2024 = vmax.f32 %v1982, 0.0
    %v2025 = vmax.f32 %v1987, 0.0
    %v2026 = vmax.f32 %v1992, 0.0
    %v2027 = vmax.f32 %v1997, 0.0
    %v2028 = vmax.f32 %v2002, 0.0
    %v2029 = vmax.f32 %v2007, 0.0
    %v2030 = vmax.f32 %v2012, 0.0
    %s2031 = scalar_lea.vmem [#allocation10], 256
    %v2032 = vld [vmem:[%s2031] sm:$0xff]
    %v2033 = vld [vmem:[%s2031 + $0x8] sm:$0xff]
    %v2034 = vld [vmem:[%s2031 + $0x10] sm:$0xff]
    %v2035 = vld [vmem:[%s2031 + $0x18] sm:$0xff]
    %v2036 = vld [vmem:[%s2031 + $0x20] sm:$0xff]
    %v2037 = vld [vmem:[%s2031 + $0x28] sm:$0xff]
    %v2038 = vld [vmem:[%s2031 + $0x30] sm:$0xff]
    %v2039 = vld [vmem:[%s2031 + $0x38] sm:$0xff]
    %v2040 = vld [vmem:[%s2031 + $0x40] sm:$0xff]
    %v2041 = vld [vmem:[%s2031 + $0x48] sm:$0xff]
    %v2042 = vld [vmem:[%s2031 + $0x50] sm:$0xff]
    %v2043 = vld [vmem:[%s2031 + $0x58] sm:$0xff]
    %v2044 = vld [vmem:[%s2031 + $0x60] sm:$0xff]
    %v2045 = vld [vmem:[%s2031 + $0x68] sm:$0xff]
    %v2046 = vld [vmem:[%s2031 + $0x70] sm:$0xff]
    %v2047 = vld [vmem:[%s2031 + $0x78] sm:$0xff]
    %s2048 = scalar_lea.vmem %s6, 2
    %v2049 = vld [vmem:[%s2048] sm:$0x1]
    %v2051 = vlaneseq
    %v2052 = vshrl.u32 %v2051, 7
    %v2053 = vsub.s32 0, %v2052
    %v2054 = vrot.slane %v2049, %v2053
    %2056 = vmatprep.subr.mxu0 0.0
    %2057 = vmatpush1.msra.mxu0 %v2032
    %2058 = vmatprep.subr.mxu0 0.0
    %2059 = vmatpush1.msra.mxu0 %v2033
    %2060 = vmatprep.subr.mxu0 0.0
    %2061 = vmatpush1.msra.mxu0 %v2034
    %2062 = vmatprep.subr.mxu0 0.0
    %2063 = vmatpush1.msra.mxu0 %v2035
    %2064 = vmatprep.subr.mxu0 0.0
    %2065 = vmatpush1.msra.mxu0 %v2036
    %2066 = vmatprep.subr.mxu0 0.0
    %2067 = vmatpush1.msra.mxu0 %v2037
    %2068 = vmatprep.subr.mxu0 0.0
    %2069 = vmatpush1.msra.mxu0 %v2038
    %2070 = vmatprep.subr.mxu0 0.0
    %2071 = vmatpush1.msra.mxu0 %v2039
    %2072 = vmatprep.subr.mxu0 0.0
    %2073 = vmatpush1.msra.mxu0 %v2040
    %2074 = vmatprep.subr.mxu0 0.0
    %2075 = vmatpush1.msra.mxu0 %v2041
    %2076 = vmatprep.subr.mxu0 0.0
    %2077 = vmatpush1.msra.mxu0 %v2042
    %2078 = vmatprep.subr.mxu0 0.0
    %2079 = vmatpush1.msra.mxu0 %v2043
    %2080 = vmatprep.subr.mxu0 0.0
    %2081 = vmatpush1.msra.mxu0 %v2044
    %2082 = vmatprep.subr.mxu0 0.0
    %2083 = vmatpush1.msra.mxu0 %v2045
    %2084 = vmatprep.subr.mxu0 0.0
    %2085 = vmatpush1.msra.mxu0 %v2046
    %2086 = vmatprep.subr.mxu0 0.0
    %2087 = vmatpush1.msra.mxu0 %v2047
    %2088 = vmatprep.subr.mxu0 0.0
    %2089 = vmatpush1.msra.mxu0 0.0
    %2090 = vmatprep.subr.mxu0 0.0
    %2091 = vmatpush1.msra.mxu0 0.0
    %2092 = vmatprep.subr.mxu0 0.0
    %2093 = vmatpush1.msra.mxu0 0.0
    %2094 = vmatprep.subr.mxu0 0.0
    %2095 = vmatpush1.msra.mxu0 0.0
    %2096 = vmatprep.subr.mxu0 0.0
    %2097 = vmatpush1.msra.mxu0 0.0
    %2098 = vmatprep.subr.mxu0 0.0
    %2099 = vmatpush1.msra.mxu0 0.0
    %2100 = vmatprep.subr.mxu0 0.0
    %2101 = vmatpush1.msra.mxu0 0.0
    %2102 = vmatprep.subr.mxu0 0.0
    %2103 = vmatpush1.msra.mxu0 0.0
    %2104 = vmatprep.subr.mxu0 0.0
    %2105 = vmatpush1.msra.mxu0 0.0
    %2106 = vmatprep.subr.mxu0 0.0
    %2107 = vmatpush1.msra.mxu0 0.0
    %2108 = vmatprep.subr.mxu0 0.0
    %2109 = vmatpush1.msra.mxu0 0.0
    %2110 = vmatprep.subr.mxu0 0.0
    %2111 = vmatpush1.msra.mxu0 0.0
    %2112 = vmatprep.subr.mxu0 0.0
    %2113 = vmatpush1.msra.mxu0 0.0
    %2114 = vmatprep.subr.mxu0 0.0
    %2115 = vmatpush1.msra.mxu0 0.0
    %2116 = vmatprep.subr.mxu0 0.0
    %2117 = vmatpush1.msra.mxu0 0.0
    %2118 = vmatprep.subr.mxu0 0.0
    %2119 = vmatpush1.msra.mxu0 0.0
    %2120 = vmatprep.mubr.f32.mxu0 0.0
    %2121 = vmatmul.mubr.f32.gmra.mrb[0].mxu0 %v2015
    %v2122 = vpop.f32.mrb[0].mxu0
    %v2123 = vadd.f32 %v2054, %v2122
    %v2124 = vpop.f32.mrb[0].mxu0
    %2125 = vmatprep.mubr.f32.mxu0 0.0
    %2126 = vmatmul.mubr.f32.gmra.mrb[0].mxu0 %v2016
    %v2127 = vpop.f32.mrb[0].mxu0
    %v2128 = vadd.f32 %v2054, %v2127
    %v2129 = vpop.f32.mrb[0].mxu0
    %2130 = vmatprep.mubr.f32.mxu0 0.0
    %2131 = vmatmul.mubr.f32.gmra.mrb[0].mxu0 %v2017
    %v2132 = vpop.f32.mrb[0].mxu0
    %v2133 = vadd.f32 %v2054, %v2132
    %v2134 = vpop.f32.mrb[0].mxu0
    %2135 = vmatprep.mubr.f32.mxu0 0.0
    %2136 = vmatmul.mubr.f32.gmra.mrb[0].mxu0 %v2018
    %v2137 = vpop.f32.mrb[0].mxu0
    %v2138 = vadd.f32 %v2054, %v2137
    %v2139 = vpop.f32.mrb[0].mxu0
    %2140 = vmatprep.mubr.f32.mxu0 0.0
    %2141 = vmatmul.mubr.f32.gmra.mrb[0].mxu0 %v2019
    %v2142 = vpop.f32.mrb[0].mxu0
    %v2143 = vadd.f32 %v2054, %v2142
    %v2144 = vpop.f32.mrb[0].mxu0
    %2145 = vmatprep.mubr.f32.mxu0 0.0
    %2146 = vmatmul.mubr.f32.gmra.mrb[0].mxu0 %v2020
    %v2147 = vpop.f32.mrb[0].mxu0
    %v2148 = vadd.f32 %v2054, %v2147
    %v2149 = vpop.f32.mrb[0].mxu0
    %2150 = vmatprep.mubr.f32.mxu0 0.0
    %2151 = vmatmul.mubr.f32.gmra.mrb[0].mxu0 %v2021
    %v2152 = vpop.f32.mrb[0].mxu0
    %v2153 = vadd.f32 %v2054, %v2152
    %v2154 = vpop.f32.mrb[0].mxu0
    %2155 = vmatprep.mubr.f32.mxu0 0.0
    %2156 = vmatmul.mubr.f32.gmra.mrb[0].mxu0 %v2022
    %v2157 = vpop.f32.mrb[0].mxu0
    %v2158 = vadd.f32 %v2054, %v2157
    %v2159 = vpop.f32.mrb[0].mxu0
    %2160 = vmatprep.mubr.f32.mxu0 0.0
    %2161 = vmatmul.mubr.f32.gmra.mrb[0].mxu0 %v2023
    %v2162 = vpop.f32.mrb[0].mxu0
    %v2163 = vadd.f32 %v2054, %v2162
    %v2164 = vpop.f32.mrb[0].mxu0
    %2165 = vmatprep.mubr.f32.mxu0 0.0
    %2166 = vmatmul.mubr.f32.gmra.mrb[0].mxu0 %v2024
    %v2167 = vpop.f32.mrb[0].mxu0
    %v2168 = vadd.f32 %v2054, %v2167
    %v2169 = vpop.f32.mrb[0].mxu0
    %2170 = vmatprep.mubr.f32.mxu0 0.0
    %2171 = vmatmul.mubr.f32.gmra.mrb[0].mxu0 %v2025
    %v2172 = vpop.f32.mrb[0].mxu0
    %v2173 = vadd.f32 %v2054, %v2172
    %v2174 = vpop.f32.mrb[0].mxu0
    %2175 = vmatprep.mubr.f32.mxu0 0.0
    %2176 = vmatmul.mubr.f32.gmra.mrb[0].mxu0 %v2026
    %v2177 = vpop.f32.mrb[0].mxu0
    %v2178 = vadd.f32 %v2054, %v2177
    %v2179 = vpop.f32.mrb[0].mxu0
    %2180 = vmatprep.mubr.f32.mxu0 0.0
    %2181 = vmatmul.mubr.f32.gmra.mrb[0].mxu0 %v2027
    %v2182 = vpop.f32.mrb[0].mxu0
    %v2183 = vadd.f32 %v2054, %v2182
    %v2184 = vpop.f32.mrb[0].mxu0
    %2185 = vmatprep.mubr.f32.mxu0 0.0
    %2186 = vmatmul.mubr.f32.gmra.mrb[0].mxu0 %v2028
    %v2187 = vpop.f32.mrb[0].mxu0
    %v2188 = vadd.f32 %v2054, %v2187
    %v2189 = vpop.f32.mrb[0].mxu0
    %2190 = vmatprep.mubr.f32.mxu0 0.0
    %2191 = vmatmul.mubr.f32.gmra.mrb[0].mxu0 %v2029
    %v2192 = vpop.f32.mrb[0].mxu0
    %v2193 = vadd.f32 %v2054, %v2192
    %v2194 = vpop.f32.mrb[0].mxu0
    %2195 = vmatprep.mubr.f32.mxu0 0.0
    %2196 = vmatmul.mubr.f32.gmra.mrb[0].mxu0 %v2030
    %v2197 = vpop.f32.mrb[0].mxu0
    %v2198 = vadd.f32 %v2054, %v2197
    %v2199 = vpop.f32.mrb[0].mxu0
    %2200 = vdwg.mxu0
    %s2201 = scalar_lea.vmem [#allocation12], 384
    %v2202 = vld [vmem:[%s2201] sm:$0xff]
    %v2203 = vld [vmem:[%s2201 + $0x8] sm:$0xff]
    %v2204 = vld [vmem:[%s2201 + $0x10] sm:$0xff]
    %v2205 = vld [vmem:[%s2201 + $0x18] sm:$0xff]
    %v2206 = vld [vmem:[%s2201 + $0x20] sm:$0xff]
    %v2207 = vld [vmem:[%s2201 + $0x28] sm:$0xff]
    %v2208 = vld [vmem:[%s2201 + $0x30] sm:$0xff]
    %v2209 = vld [vmem:[%s2201 + $0x38] sm:$0xff]
    %v2210 = vld [vmem:[%s2201 + $0x40] sm:$0xff]
    %v2211 = vld [vmem:[%s2201 + $0x48] sm:$0xff]
    %v2212 = vld [vmem:[%s2201 + $0x50] sm:$0xff]
    %v2213 = vld [vmem:[%s2201 + $0x58] sm:$0xff]
    %v2214 = vld [vmem:[%s2201 + $0x60] sm:$0xff]
    %v2215 = vld [vmem:[%s2201 + $0x68] sm:$0xff]
    %v2216 = vld [vmem:[%s2201 + $0x70] sm:$0xff]
    %v2217 = vld [vmem:[%s2201 + $0x78] sm:$0xff]
    %2218 = vmatprep.subr.mxu0 0.0
    %2219 = vmatpush1.msra.mxu0 %v2202
    %2220 = vmatprep.subr.mxu0 0.0
    %2221 = vmatpush1.msra.mxu0 %v2203
    %2222 = vmatprep.subr.mxu0 0.0
    %2223 = vmatpush1.msra.mxu0 %v2204
    %2224 = vmatprep.subr.mxu0 0.0
    %2225 = vmatpush1.msra.mxu0 %v2205
    %2226 = vmatprep.subr.mxu0 0.0
    %2227 = vmatpush1.msra.mxu0 %v2206
    %2228 = vmatprep.subr.mxu0 0.0
    %2229 = vmatpush1.msra.mxu0 %v2207
    %2230 = vmatprep.subr.mxu0 0.0
    %2231 = vmatpush1.msra.mxu0 %v2208
    %2232 = vmatprep.subr.mxu0 0.0
    %2233 = vmatpush1.msra.mxu0 %v2209
    %2234 = vmatprep.subr.mxu0 0.0
    %2235 = vmatpush1.msra.mxu0 %v2210
    %2236 = vmatprep.subr.mxu0 0.0
    %2237 = vmatpush1.msra.mxu0 %v2211
    %2238 = vmatprep.subr.mxu0 0.0
    %2239 = vmatpush1.msra.mxu0 %v2212
    %2240 = vmatprep.subr.mxu0 0.0
    %2241 = vmatpush1.msra.mxu0 %v2213
    %2242 = vmatprep.subr.mxu0 0.0
    %2243 = vmatpush1.msra.mxu0 %v2214
    %2244 = vmatprep.subr.mxu0 0.0
    %2245 = vmatpush1.msra.mxu0 %v2215
    %2246 = vmatprep.subr.mxu0 0.0
    %2247 = vmatpush1.msra.mxu0 %v2216
    %2248 = vmatprep.subr.mxu0 0.0
    %2249 = vmatpush1.msra.mxu0 %v2217
    %2250 = vmatprep.subr.mxu0 0.0
    %2251 = vmatpush1.msra.mxu0 0.0
    %2252 = vmatprep.subr.mxu0 0.0
    %2253 = vmatpush1.msra.mxu0 0.0
    %2254 = vmatprep.subr.mxu0 0.0
    %2255 = vmatpush1.msra.mxu0 0.0
    %2256 = vmatprep.subr.mxu0 0.0
    %2257 = vmatpush1.msra.mxu0 0.0
    %2258 = vmatprep.subr.mxu0 0.0
    %2259 = vmatpush1.msra.mxu0 0.0
    %2260 = vmatprep.subr.mxu0 0.0
    %2261 = vmatpush1.msra.mxu0 0.0
    %2262 = vmatprep.subr.mxu0 0.0
    %2263 = vmatpush1.msra.mxu0 0.0
    %2264 = vmatprep.subr.mxu0 0.0
    %2265 = vmatpush1.msra.mxu0 0.0
    %2266 = vmatprep.subr.mxu0 0.0
    %2267 = vmatpush1.msra.mxu0 0.0
    %2268 = vmatprep.subr.mxu0 0.0
    %2269 = vmatpush1.msra.mxu0 0.0
    %2270 = vmatprep.subr.mxu0 0.0
    %2271 = vmatpush1.msra.mxu0 0.0
    %2272 = vmatprep.subr.mxu0 0.0
    %2273 = vmatpush1.msra.mxu0 0.0
    %2274 = vmatprep.subr.mxu0 0.0
    %2275 = vmatpush1.msra.mxu0 0.0
    %2276 = vmatprep.subr.mxu0 0.0
    %2277 = vmatpush1.msra.mxu0 0.0
    %2278 = vmatprep.subr.mxu0 0.0
    %2279 = vmatpush1.msra.mxu0 0.0
    %2280 = vmatprep.subr.mxu0 0.0
    %2281 = vmatpush1.msra.mxu0 0.0
    %2282 = vmatprep.mubr.f32.mxu0 0.0
    %2283 = vmatmul.mubr.f32.gmra.mrb[0].mxu0 %v2123
    %v2284 = vpop.f32.mrb[0].mxu0
    %v2285 = vadd.f32 0.0, %v2284
    %v2286 = vpop.f32.mrb[0].mxu0
    %2287 = vmatprep.mubr.f32.mxu0 0.0
    %2288 = vmatmul.mubr.f32.gmra.mrb[0].mxu0 %v2128
    %v2289 = vpop.f32.mrb[0].mxu0
    %v2290 = vadd.f32 0.0, %v2289
    %v2291 = vpop.f32.mrb[0].mxu0
    %2292 = vmatprep.mubr.f32.mxu0 0.0
    %2293 = vmatmul.mubr.f32.gmra.mrb[0].mxu0 %v2133
    %v2294 = vpop.f32.mrb[0].mxu0
    %v2295 = vadd.f32 0.0, %v2294
    %v2296 = vpop.f32.mrb[0].mxu0
    %2297 = vmatprep.mubr.f32.mxu0 0.0
    %2298 = vmatmul.mubr.f32.gmra.mrb[0].mxu0 %v2138
    %v2299 = vpop.f32.mrb[0].mxu0
    %v2300 = vadd.f32 0.0, %v2299
    %v2301 = vpop.f32.mrb[0].mxu0
    %2302 = vmatprep.mubr.f32.mxu0 0.0
    %2303 = vmatmul.mubr.f32.gmra.mrb[0].mxu0 %v2143
    %v2304 = vpop.f32.mrb[0].mxu0
    %v2305 = vadd.f32 0.0, %v2304
    %v2306 = vpop.f32.mrb[0].mxu0
    %2307 = vmatprep.mubr.f32.mxu0 0.0
    %2308 = vmatmul.mubr.f32.gmra.mrb[0].mxu0 %v2148
    %v2309 = vpop.f32.mrb[0].mxu0
    %v2310 = vadd.f32 0.0, %v2309
    %v2311 = vpop.f32.mrb[0].mxu0
    %2312 = vmatprep.mubr.f32.mxu0 0.0
    %2313 = vmatmul.mubr.f32.gmra.mrb[0].mxu0 %v2153
    %v2314 = vpop.f32.mrb[0].mxu0
    %v2315 = vadd.f32 0.0, %v2314
    %v2316 = vpop.f32.mrb[0].mxu0
    %2317 = vmatprep.mubr.f32.mxu0 0.0
    %2318 = vmatmul.mubr.f32.gmra.mrb[0].mxu0 %v2158
    %v2319 = vpop.f32.mrb[0].mxu0
    %v2320 = vadd.f32 0.0, %v2319
    %v2321 = vpop.f32.mrb[0].mxu0
    %2322 = vmatprep.mubr.f32.mxu0 0.0
    %2323 = vmatmul.mubr.f32.gmra.mrb[0].mxu0 %v2163
    %v2324 = vpop.f32.mrb[0].mxu0
    %v2325 = vadd.f32 0.0, %v2324
    %v2326 = vpop.f32.mrb[0].mxu0
    %2327 = vmatprep.mubr.f32.mxu0 0.0
    %2328 = vmatmul.mubr.f32.gmra.mrb[0].mxu0 %v2168
    %v2329 = vpop.f32.mrb[0].mxu0
    %v2330 = vadd.f32 0.0, %v2329
    %v2331 = vpop.f32.mrb[0].mxu0
    %2332 = vmatprep.mubr.f32.mxu0 0.0
    %2333 = vmatmul.mubr.f32.gmra.mrb[0].mxu0 %v2173
    %v2334 = vpop.f32.mrb[0].mxu0
    %v2335 = vadd.f32 0.0, %v2334
    %v2336 = vpop.f32.mrb[0].mxu0
    %2337 = vmatprep.mubr.f32.mxu0 0.0
    %2338 = vmatmul.mubr.f32.gmra.mrb[0].mxu0 %v2178
    %v2339 = vpop.f32.mrb[0].mxu0
    %v2340 = vadd.f32 0.0, %v2339
    %v2341 = vpop.f32.mrb[0].mxu0
    %2342 = vmatprep.mubr.f32.mxu0 0.0
    %2343 = vmatmul.mubr.f32.gmra.mrb[0].mxu0 %v2183
    %v2344 = vpop.f32.mrb[0].mxu0
    %v2345 = vadd.f32 0.0, %v2344
    %v2346 = vpop.f32.mrb[0].mxu0
    %2347 = vmatprep.mubr.f32.mxu0 0.0
    %2348 = vmatmul.mubr.f32.gmra.mrb[0].mxu0 %v2188
    %v2349 = vpop.f32.mrb[0].mxu0
    %v2350 = vadd.f32 0.0, %v2349
    %v2351 = vpop.f32.mrb[0].mxu0
    %2352 = vmatprep.mubr.f32.mxu0 0.0
    %2353 = vmatmul.mubr.f32.gmra.mrb[0].mxu0 %v2193
    %v2354 = vpop.f32.mrb[0].mxu0
    %v2355 = vadd.f32 0.0, %v2354
    %v2356 = vpop.f32.mrb[0].mxu0
    %2357 = vmatprep.mubr.f32.mxu0 0.0
    %2358 = vmatmul.mubr.f32.gmra.mrb[0].mxu0 %v2198
    %v2359 = vpop.f32.mrb[0].mxu0
    %v2360 = vadd.f32 0.0, %v2359
    %v2361 = vpop.f32.mrb[0].mxu0
    %2362 = vdwg.mxu0
    %v2363 = vadd.f32 %v1665, %v2285
    %v2364 = vadd.f32 %v1666, %v2290
    %v2365 = vadd.f32 %v1667, %v2295
    %v2366 = vadd.f32 %v1668, %v2300
    %v2367 = vadd.f32 %v1669, %v2305
    %v2368 = vadd.f32 %v1670, %v2310
    %v2369 = vadd.f32 %v1671, %v2315
    %v2370 = vadd.f32 %v1672, %v2320
    %v2371 = vadd.f32 %v1673, %v2325
    %v2372 = vadd.f32 %v1674, %v2330
    %v2373 = vadd.f32 %v1675, %v2335
    %v2374 = vadd.f32 %v1676, %v2340
    %v2375 = vadd.f32 %v1677, %v2345
    %v2376 = vadd.f32 %v1678, %v2350
    %v2377 = vadd.f32 %v1679, %v2355
    %v2378 = vadd.f32 %v1680, %v2360
    %v2379 = vld [vmem:[%s8] sm:$0x1]
    %v2381 = vlaneseq
    %v2382 = vshrl.u32 %v2381, 7
    %v2383 = vsub.s32 0, %v2382
    %v2384 = vrot.slane %v2379, %v2383
    %v2386 = vadd.f32 %v2363, %v2384
    %v2387 = vadd.f32 %v2364, %v2384
    %v2388 = vadd.f32 %v2365, %v2384
    %v2389 = vadd.f32 %v2366, %v2384
    %v2390 = vadd.f32 %v2367, %v2384
    %v2391 = vadd.f32 %v2368, %v2384
    %v2392 = vadd.f32 %v2369, %v2384
    %v2393 = vadd.f32 %v2370, %v2384
    %v2394 = vadd.f32 %v2371, %v2384
    %v2395 = vadd.f32 %v2372, %v2384
    %v2396 = vadd.f32 %v2373, %v2384
    %v2397 = vadd.f32 %v2374, %v2384
    %v2398 = vadd.f32 %v2375, %v2384
    %v2399 = vadd.f32 %v2376, %v2384
    %v2400 = vadd.f32 %v2377, %v2384
    %v2401 = vadd.f32 %v2378, %v2384
    %2402 = vst [vmem:[#allocation13] sm:$0xff] %v2386
    %2403 = vst [vmem:[#allocation13 + $0x8] sm:$0xff] %v2387
    %2404 = vst [vmem:[#allocation13 + $0x10] sm:$0xff] %v2388
    %2405 = vst [vmem:[#allocation13 + $0x18] sm:$0xff] %v2389
    %2406 = vst [vmem:[#allocation13 + $0x20] sm:$0xff] %v2390
    %2407 = vst [vmem:[#allocation13 + $0x28] sm:$0xff] %v2391
    %2408 = vst [vmem:[#allocation13 + $0x30] sm:$0xff] %v2392
    %2409 = vst [vmem:[#allocation13 + $0x38] sm:$0xff] %v2393
    %2410 = vst [vmem:[#allocation13 + $0x40] sm:$0xff] %v2394
    %2411 = vst [vmem:[#allocation13 + $0x48] sm:$0xff] %v2395
    %2412 = vst [vmem:[#allocation13 + $0x50] sm:$0xff] %v2396
    %2413 = vst [vmem:[#allocation13 + $0x58] sm:$0xff] %v2397
    %2414 = vst [vmem:[#allocation13 + $0x60] sm:$0xff] %v2398
    %2415 = vst [vmem:[#allocation13 + $0x68] sm:$0xff] %v2399
    %2416 = vst [vmem:[#allocation13 + $0x70] sm:$0xff] %v2400
    %2417 = vst [vmem:[#allocation13 + $0x78] sm:$0xff] %v2401
    // Predicated region
    $region62: #{tpu_custom_call.1} parent=1 // pred_check
      _
    $region63: #{tpu_custom_call.1} parent=1 // pred_check_branch
      %2419 = sbr.rel (0) target = $region65
    $region64: #{tpu_custom_call.1} parent=1 // pred_region
      %s2421 = ssub.s32 2048, 2048
      %2422 = vsyncadd [#allocation4], %s2421
      %s2423 = sshll.u32 [#allocation13], 4
      %s2424 = int_to_ptr.vmem [resolvable:$true] %s2423
      %2429 = dma.vmem_to_hbm [thread:$0]  %s2424, 2048, %s9, [#allocation4], 128, 128, 8
    $region65: #{tpu_custom_call.1} parent=1 // pred_fallthru
      _
    // Predicated region
    $region66: #{tpu_custom_call.1} parent=1 // pred_check
      _
    $region67: #{tpu_custom_call.1} parent=1 // pred_check_branch
      %2431 = sbr.rel (0) target = $region69
    $region68: #{tpu_custom_call.1} parent=1 // pred_region
      %2432 = dma.done [#allocation4], 2048
    $region69: #{tpu_custom_call.1} parent=1 // pred_fallthru
      _
    %2433 = vsyncpa [#allocation3], 1
    %2434 = vsyncpa [#allocation8], 1
    %2435 = vsyncpa [#allocation11], 1
    %2436 = vsyncpa [#allocation4], 1
    %2437 = vsyncpa [#allocation5], 1

</llo_original>
